<compile_context>
chip_gen: v7x
topology: tpu7x:2x2x1
jax: 0.10.0
libtpu: 0.0.40
codegen_flags: <defaults>
</compile_context>

<pallas_src>
import functools

import numpy as np

import jax
import jax.numpy as jnp
from jax import lax
from jax.experimental import pallas as pl
from jax.experimental.pallas import tpu as pltpu


def _round_up(a, b):
    return ((a + b - 1) // b) * b


def _self_atten_kernel(x_ref, w1_ref, w2_ref, ssum_ref, out_ref, pen_ref, *,
                       M, P, ninp, nweights, n_rows, needs_mask):
    """One large row block per grid step.

    x_ref   : (RB, P*M*ninp)                 P logical rows packed per row
    w1_ref  : (P*M*ninp, P*M*ninterm)        kron(I_{P*M}, w1.T)
    w2_ref  : (P*M*ninterm, M*P*nw*ninp)     expanded layer-2 weights
    ssum_ref: (P*nw*ninp, P)                 per-slot summing matrix (1/ninp)
    out_ref : (RB, P*nw*ninp)                lane-dense packed output
    pen_ref : (1, 1, 128)                    lane-dense per-block penalty part
    """
    nw = nweights
    strip = nw * ninp                       # lanes per packed logical row slot
    W = P * strip                           # output width per physical row
    RB = x_ref.shape[0]

    x = x_ref[...]

    # layer1 -> tanh : one lane-dense MXU matmul, f32 accumulation.
    inter = jnp.tanh(jnp.dot(x, w1_ref[...],
                             preferred_element_type=jnp.float32))

    # layer2 (expanded): logits[:, m*W + s*strip + k*ninp + i] = logit(s, m, k)
    # replicated across the ninp feature lanes i.
    logits = jnp.dot(inter.astype(w2_ref.dtype), w2_ref[...],
                     preferred_element_type=jnp.float32)

    # ---- softmax over the M chunks: all full-width (RB, W) ops ----
    lg = [logits[:, m * W:(m + 1) * W] for m in range(M)]
    mx = lg[0]
    for m in range(1, M):
        mx = jnp.maximum(mx, lg[m])
    es = [jnp.exp(v - mx) for v in lg]
    den = es[0]
    for m in range(1, M):
        den = den + es[m]

    if hasattr(pl, "reciprocal"):
        inv = pl.reciprocal(den, approx=True)
        inv = inv * (2.0 - den * inv)       # Newton step 1
        inv = inv * (2.0 - den * inv)       # Newton step 2 (f32-exact)
    else:                                   # very old jax fallback
        inv = 1.0 / den

    if needs_mask:
        # Zero the softmax of padded logical rows so they contribute nothing
        # to the penalty (their outputs are trimmed by the wrapper anyway).
        base = pl.program_id(0) * RB
        rid = base + lax.broadcasted_iota(jnp.int32, (RB, 1), 0)
        cols = []
        for s in range(P):
            ok = ((rid * P + s) < n_rows).astype(jnp.float32)
            cols.append(jnp.broadcast_to(ok, (RB, strip)))
        valid = cols[0] if P == 1 else jnp.concatenate(cols, axis=1)
        inv = inv * valid

    ann = [e * inv for e in es]             # softmax, replicated over ninp lanes

    # ---- attention-weighted sum: M full-width FMAs, one full-width store ----
    xf = x.astype(jnp.float32)
    out_acc = None
    for m in range(M):
        pieces = []
        for s in range(P):
            xc = xf[:, (s * M + m) * ninp:(s * M + m + 1) * ninp]
            pieces.extend([xc] * nw)        # tile each chunk nw times
        xt = pieces[0] if len(pieces) == 1 else jnp.concatenate(pieces, axis=1)
        term = ann[m] * xt
        out_acc = term if out_acc is None else out_acc + term
    out_ref[...] = out_acc.astype(out_ref.dtype)

    # ---- orthogonality penalty partial: sum_rows (||A^T A||_F^2 - 2 tr) ----
    # d_{mm'}(row, slot) = sum_k ann[m,k] ann[m',k], obtained from the
    # replicated arrays with a tiny MXU matmul against ssum (1/ninp per lane).
    ssum = ssum_ref[...]
    acc = None
    for m in range(M):
        for m2 in range(m, M):
            q = ann[m] * ann[m2]
            d = jnp.dot(q, ssum, preferred_element_type=jnp.float32)  # (RB, P)
            t = d * (d - 2.0) if m == m2 else 2.0 * (d * d)
            acc = t if acc is None else acc + t
    pen = jnp.sum(acc, axis=0, keepdims=True)       # (1, P)
    pen = jnp.sum(pen, axis=1, keepdims=True)       # (1, 1)
    pen_ref[...] = jnp.broadcast_to(pen, pen_ref.shape).astype(jnp.float32)


@functools.partial(
    jax.jit,
    static_argnames=("ninp", "ninterm", "nweights", "scale", "row_block",
                     "lane_pack", "mxu_dtype"))
def self_atten_forward(uttemb, w1, w2, *, ninp, ninterm, nweights, scale=1.0,
                       row_block=1024, lane_pack=128, mxu_dtype=jnp.float32):
    """Pallas TPU implementation of SelfAttenModel.forward.

    uttemb : (B, T, D) with D % ninp == 0
    w1     : (ninterm, ninp)      PyTorch nn.Linear layout (out, in)
    w2     : (nweights, ninterm)
    returns (totaloutput (B, T, ninp*nweights), penalty scalar)

    lane_pack: 128 (v5e-matched MXU) or 256 (fills the 256-deep v6e/v7x MXU).
    mxu_dtype: jnp.float32 (exact) or jnp.bfloat16 (v6e/v7x fast matmuls).
    """
    B, T, D = uttemb.shape
    if D % ninp != 0:
        raise ValueError("Splitting of input embedding is invalid!")
    M = D // ninp
    nw = nweights
    R = B * T
    out_dtype = uttemb.dtype

    # ---- pack P logical rows per physical row (lane-dense rows) ----
    P = max(1, lane_pack // D) if D <= lane_pack else 1
    strip = nw * ninp
    W = P * strip

    n_phys = -(-R // P)
    rb = _round_up(min(row_block, _round_up(n_phys, 8)), 8)
    # Prefer >= 2 grid blocks so the "parallel" axis can shard across
    # TensorCores (v7x has two per chip).
    if rb >= 16 and _round_up(n_phys, rb) // rb < 2:
        rb = _round_up(rb // 2, 8)
    n_phys_pad = _round_up(n_phys, rb)
    num_blocks = n_phys_pad // rb
    r_pad = n_phys_pad * P
    needs_mask = (r_pad != R)

    x2d = uttemb.reshape(R, D)
    if r_pad != R:
        x2d = jnp.concatenate(
            [x2d, jnp.zeros((r_pad - R, D), out_dtype)], axis=0)
    x_wide = x2d.reshape(n_phys_pad, P * D).astype(mxu_dtype)

    # ---- layer-1 block-diagonal weights (one big lane-dense matmul) ----
    eye_pm = jnp.eye(P * M, dtype=jnp.float32)
    w1w = jnp.kron(eye_pm, jnp.transpose(w1).astype(jnp.float32))
    w1w = w1w.astype(mxu_dtype)

    # ---- layer-2 expanded weights: column (m*W + s*strip + k*ninp + i) holds
    #      w2[k, j] on row ((s*M+m)*ninterm + j) -> the matmul emits every
    #      logit already replicated across the ninp feature lanes.
    w2rep = jnp.repeat(jnp.transpose(w2).astype(jnp.float32), ninp, axis=1)
    e1 = np.zeros((P * M, M, P), np.float32)
    for s in range(P):
        for m in range(M):
            e1[s * M + m, m, s] = 1.0
    w2e = jnp.einsum("qms,jc->qjmsc", jnp.asarray(e1), w2rep)
    w2e = w2e.reshape(P * M * ninterm, M * W).astype(mxu_dtype)

    # ---- constant strip-summing matrix for the penalty dot products ----
    ssum_np = np.zeros((W, P), np.float32)
    for s in range(P):
        ssum_np[s * strip:(s + 1) * strip, s] = 1.0 / float(ninp)
    ssum = jnp.asarray(ssum_np)

    kernel = functools.partial(
        _self_atten_kernel, M=M, P=P, ninp=ninp, nweights=nw,
        n_rows=R, needs_mask=needs_mask)

    out_wide, pen_parts = pl.pallas_call(
        kernel,
        out_shape=(
            jax.ShapeDtypeStruct((n_phys_pad, W), out_dtype),
            jax.ShapeDtypeStruct((num_blocks, 1, 128), jnp.float32),
        ),
        grid=(num_blocks,),
        in_specs=[
            pl.BlockSpec((rb, P * D), lambda i: (i, 0)),
            pl.BlockSpec((P * D, P * M * ninterm), lambda i: (0, 0)),
            pl.BlockSpec((P * M * ninterm, M * W), lambda i: (0, 0)),
            pl.BlockSpec((W, P), lambda i: (0, 0)),
        ],
        out_specs=(
            pl.BlockSpec((rb, W), lambda i: (i, 0)),
            pl.BlockSpec((1, 1, 128), lambda i: (i, 0, 0)),
        ),
        compiler_params=pltpu.CompilerParams(
            dimension_semantics=("parallel",),
            vmem_limit_bytes=64 * 1024 * 1024),
    )(x_wide, w1w, w2e, ssum)

    out = out_wide.reshape(r_pad, strip)[:R].reshape(B, T, strip)
    # Kernel partials exclude the constant "+nw" per logical row.
    penalty = scale * (jnp.sum(pen_parts[:, 0, 0]) + float(nw * R))
    return out, penalty


def self_atten_reference(uttemb, w1, w2, *, ninp, nweights, scale=1.0):
    """Pure-JAX reference mirroring the PyTorch forward."""
    B, T, D = uttemb.shape
    M = D // ninp
    proc = uttemb.reshape(B, T, M, ninp)
    inter = jnp.tanh(jnp.einsum("btmi,ji->btmj", proc, w1))
    logits = jnp.einsum("btmj,kj->btmk", inter, w2)
    annot = jax.nn.softmax(logits, axis=2)               # softmax over M
    out = jnp.einsum("btmk,btmi->btki", annot, proc).reshape(
        B, T, nweights * ninp)
    ata = jnp.einsum("btmk,btml->btkl", annot, annot)
    eye = jnp.eye(nweights, dtype=jnp.float32)
    pen = scale * jnp.sum((ata - eye) ** 2)
    return out, pen


if __name__ == "__main__":
    # Module hyper-parameters (SelfAttenModel(ninp, ninterm, nweights)).
    ninp, ninterm, nweights = 16, 32, 4
    B, T, M = 2, 8, 4                     # uttemb: (B, T, M * ninp)

    key = jax.random.PRNGKey(0)
    kw1, kw2, kx = jax.random.split(key, 3)
    initrange = 0.1
    w1 = jax.random.uniform(kw1, (ninterm, ninp), jnp.float32,
                            -initrange, initrange)
    w2 = jax.random.uniform(kw2, (nweights, ninterm), jnp.float32,
                            -initrange, initrange)
    uttemb = jax.random.normal(kx, (B, T, M * ninp), jnp.float32)

    out_ref, pen_ref = self_atten_reference(uttemb, w1, w2, ninp=ninp,
                                            nweights=nweights, scale=1.0)

    # f32 path (exact; v5e-friendly).
    out, pen = self_atten_forward(uttemb, w1, w2, ninp=ninp,
                                  ninterm=ninterm, nweights=nweights,
                                  scale=1.0)
    out = jax.block_until_ready(out)
    pen = jax.block_until_ready(pen)
    assert out.shape == (B, T, ninp * nweights)
    assert jnp.allclose(out, out_ref, atol=1e-4, rtol=1e-4)
    assert jnp.allclose(pen, pen_ref, atol=1e-3, rtol=1e-3)

    # bf16-MXU path (v6e / v7x fast matmuls) -- looser tolerance.
    out_bf, pen_bf = self_atten_forward(uttemb, w1, w2, ninp=ninp,
                                        ninterm=ninterm, nweights=nweights,
                                        scale=1.0, mxu_dtype=jnp.bfloat16)
    out_bf = jax.block_until_ready(out_bf)
    pen_bf = jax.block_until_ready(pen_bf)
    assert jnp.allclose(out_bf.astype(jnp.float32), out_ref,
                        atol=5e-2, rtol=5e-2)
    assert jnp.allclose(pen_bf, pen_ref, atol=1e-1, rtol=5e-2)

    print("KERNEL_OK")
</pallas_src>

<mosaic_0001>
module attributes {stable_mosaic.version = 11 : i64} {
  func.func @_self_atten_kernel(%arg0: i32, %arg1: memref<8x128xf32, #tpu.memory_space<vmem>>, %arg2: memref<128x256xf32, #tpu.memory_space<vmem>>, %arg3: memref<256x512xf32, #tpu.memory_space<vmem>>, %arg4: memref<128x2xf32, #tpu.memory_space<vmem>>, %arg5: memref<8x128xf32, #tpu.memory_space<vmem>>, %arg6: memref<1x1x128xf32, #tpu.memory_space<vmem>>) attributes {dimension_semantics = [#tpu.dimension_semantics<parallel>], iteration_bounds = array<i64: 1>, scalar_prefetch = 0 : i64, scratch_operands = 0 : i64, tpu.core_type = #tpu.core_type<tc>, window_params = [{transform_indices = @transform_0, window_bounds = array<i64: 8, 128>}, {pipeline_mode = #tpu.pipeline_mode<synchronous>, transform_indices = @transform_1, window_bounds = array<i64: 128, 256>}, {pipeline_mode = #tpu.pipeline_mode<synchronous>, transform_indices = @transform_2, window_bounds = array<i64: 256, 512>}, {pipeline_mode = #tpu.pipeline_mode<synchronous>, transform_indices = @transform_3, window_bounds = array<i64: 128, 2>}, {transform_indices = @transform_4, window_bounds = array<i64: 8, 128>}, {transform_indices = @transform_5, window_bounds = array<i64: 1, 1, 128>}]} {
    %c0 = arith.constant 0 : index
    %c0_0 = arith.constant 0 : index
    %0 = vector.load %arg1[%c0, %c0_0] : memref<8x128xf32, #tpu.memory_space<vmem>>, vector<8x128xf32>
    %c0_1 = arith.constant 0 : index
    %c0_2 = arith.constant 0 : index
    %1 = vector.load %arg2[%c0_1, %c0_2] : memref<128x256xf32, #tpu.memory_space<vmem>>, vector<128x256xf32>
    %cst = arith.constant dense<0.000000e+00> : vector<8x256xf32>
    %2 = tpu.matmul %0, %1, %cst {dimension_numbers = #tpu.dot_dimension_numbers<[1], [0], [0], [1], [0, 0, 1, 1], [], []>} : vector<8x128xf32>, vector<128x256xf32>, vector<8x256xf32> -> vector<8x256xf32>
    %3 = math.tanh %2 : vector<8x256xf32>
    %c0_3 = arith.constant 0 : index
    %c0_4 = arith.constant 0 : index
    %4 = vector.load %arg3[%c0_3, %c0_4] : memref<256x512xf32, #tpu.memory_space<vmem>>, vector<256x512xf32>
    %cst_5 = arith.constant dense<0.000000e+00> : vector<8x512xf32>
    %5 = tpu.matmul %3, %4, %cst_5 {dimension_numbers = #tpu.dot_dimension_numbers<[1], [0], [0], [1], [0, 0, 1, 1], [], []>} : vector<8x256xf32>, vector<256x512xf32>, vector<8x512xf32> -> vector<8x512xf32>
    %6 = vector.extract_strided_slice %5 {offsets = [0, 0], sizes = [8, 128], strides = [1, 1]} : vector<8x512xf32> to vector<8x128xf32>
    %7 = vector.extract_strided_slice %5 {offsets = [0, 128], sizes = [8, 128], strides = [1, 1]} : vector<8x512xf32> to vector<8x128xf32>
    %8 = vector.extract_strided_slice %5 {offsets = [0, 256], sizes = [8, 128], strides = [1, 1]} : vector<8x512xf32> to vector<8x128xf32>
    %9 = vector.extract_strided_slice %5 {offsets = [0, 384], sizes = [8, 128], strides = [1, 1]} : vector<8x512xf32> to vector<8x128xf32>
    %10 = arith.maximumf %6, %7 : vector<8x128xf32>
    %11 = arith.maximumf %10, %8 : vector<8x128xf32>
    %12 = arith.maximumf %11, %9 : vector<8x128xf32>
    %13 = arith.subf %6, %12 : vector<8x128xf32>
    %14 = math.exp %13 : vector<8x128xf32>
    %15 = arith.subf %7, %12 : vector<8x128xf32>
    %16 = math.exp %15 : vector<8x128xf32>
    %17 = arith.subf %8, %12 : vector<8x128xf32>
    %18 = math.exp %17 : vector<8x128xf32>
    %19 = arith.subf %9, %12 : vector<8x128xf32>
    %20 = math.exp %19 : vector<8x128xf32>
    %21 = arith.addf %14, %16 : vector<8x128xf32>
    %22 = arith.addf %21, %18 : vector<8x128xf32>
    %23 = arith.addf %22, %20 : vector<8x128xf32>
    %24 = tpu.reciprocal %23 {approx = true} : vector<8x128xf32> -> vector<8x128xf32>
    %25 = arith.mulf %23, %24 : vector<8x128xf32>
    %cst_6 = arith.constant 2.000000e+00 : f32
    %26 = vector.broadcast %cst_6 : f32 to vector<8x128xf32>
    %27 = arith.subf %26, %25 : vector<8x128xf32>
    %28 = arith.mulf %24, %27 : vector<8x128xf32>
    %29 = arith.mulf %23, %28 : vector<8x128xf32>
    %cst_7 = arith.constant 2.000000e+00 : f32
    %30 = vector.broadcast %cst_7 : f32 to vector<8x128xf32>
    %31 = arith.subf %30, %29 : vector<8x128xf32>
    %32 = arith.mulf %28, %31 : vector<8x128xf32>
    %33 = arith.mulf %14, %32 : vector<8x128xf32>
    %34 = arith.mulf %16, %32 : vector<8x128xf32>
    %35 = arith.mulf %18, %32 : vector<8x128xf32>
    %36 = arith.mulf %20, %32 : vector<8x128xf32>
    %37 = vector.extract_strided_slice %0 {offsets = [0, 0], sizes = [8, 16], strides = [1, 1]} : vector<8x128xf32> to vector<8x16xf32>
    %38 = vector.extract_strided_slice %0 {offsets = [0, 64], sizes = [8, 16], strides = [1, 1]} : vector<8x128xf32> to vector<8x16xf32>
    %39 = tpu.concatenate %37, %37, %37, %37, %38, %38, %38, %38 in 1 : vector<8x16xf32>, vector<8x16xf32>, vector<8x16xf32>, vector<8x16xf32>, vector<8x16xf32>, vector<8x16xf32>, vector<8x16xf32>, vector<8x16xf32> -> vector<8x128xf32>
    %40 = arith.mulf %33, %39 : vector<8x128xf32>
    %41 = vector.extract_strided_slice %0 {offsets = [0, 16], sizes = [8, 16], strides = [1, 1]} : vector<8x128xf32> to vector<8x16xf32>
    %42 = vector.extract_strided_slice %0 {offsets = [0, 80], sizes = [8, 16], strides = [1, 1]} : vector<8x128xf32> to vector<8x16xf32>
    %43 = tpu.concatenate %41, %41, %41, %41, %42, %42, %42, %42 in 1 : vector<8x16xf32>, vector<8x16xf32>, vector<8x16xf32>, vector<8x16xf32>, vector<8x16xf32>, vector<8x16xf32>, vector<8x16xf32>, vector<8x16xf32> -> vector<8x128xf32>
    %44 = arith.mulf %34, %43 : vector<8x128xf32>
    %45 = arith.addf %40, %44 : vector<8x128xf32>
    %46 = vector.extract_strided_slice %0 {offsets = [0, 32], sizes = [8, 16], strides = [1, 1]} : vector<8x128xf32> to vector<8x16xf32>
    %47 = vector.extract_strided_slice %0 {offsets = [0, 96], sizes = [8, 16], strides = [1, 1]} : vector<8x128xf32> to vector<8x16xf32>
    %48 = tpu.concatenate %46, %46, %46, %46, %47, %47, %47, %47 in 1 : vector<8x16xf32>, vector<8x16xf32>, vector<8x16xf32>, vector<8x16xf32>, vector<8x16xf32>, vector<8x16xf32>, vector<8x16xf32>, vector<8x16xf32> -> vector<8x128xf32>
    %49 = arith.mulf %35, %48 : vector<8x128xf32>
    %50 = arith.addf %45, %49 : vector<8x128xf32>
    %51 = vector.extract_strided_slice %0 {offsets = [0, 48], sizes = [8, 16], strides = [1, 1]} : vector<8x128xf32> to vector<8x16xf32>
    %52 = vector.extract_strided_slice %0 {offsets = [0, 112], sizes = [8, 16], strides = [1, 1]} : vector<8x128xf32> to vector<8x16xf32>
    %53 = tpu.concatenate %51, %51, %51, %51, %52, %52, %52, %52 in 1 : vector<8x16xf32>, vector<8x16xf32>, vector<8x16xf32>, vector<8x16xf32>, vector<8x16xf32>, vector<8x16xf32>, vector<8x16xf32>, vector<8x16xf32> -> vector<8x128xf32>
    %54 = arith.mulf %36, %53 : vector<8x128xf32>
    %55 = arith.addf %50, %54 : vector<8x128xf32>
    %c0_8 = arith.constant 0 : index
    %c0_9 = arith.constant 0 : index
    %56 = vector.load %arg5[%c0_8, %c0_9] : memref<8x128xf32, #tpu.memory_space<vmem>>, vector<8x128xf32>
    tpu.vector_store %arg5[%c0_8, %c0_9], %55 {strides = array<i32>} : memref<8x128xf32, #tpu.memory_space<vmem>>, vector<8x128xf32>,
    %c0_10 = arith.constant 0 : index
    %c0_11 = arith.constant 0 : index
    %57 = vector.load %arg4[%c0_10, %c0_11] : memref<128x2xf32, #tpu.memory_space<vmem>>, vector<128x2xf32>
    %58 = arith.mulf %33, %33 : vector<8x128xf32>
    %cst_12 = arith.constant dense<0.000000e+00> : vector<8x2xf32>
    %59 = tpu.matmul %58, %57, %cst_12 {dimension_numbers = #tpu.dot_dimension_numbers<[1], [0], [0], [1], [0, 0, 1, 1], [], []>} : vector<8x128xf32>, vector<128x2xf32>, vector<8x2xf32> -> vector<8x2xf32>
    %cst_13 = arith.constant 2.000000e+00 : f32
    %60 = vector.broadcast %cst_13 : f32 to vector<8x2xf32>
    %61 = arith.subf %59, %60 : vector<8x2xf32>
    %62 = arith.mulf %59, %61 : vector<8x2xf32>
    %63 = arith.mulf %33, %34 : vector<8x128xf32>
    %cst_14 = arith.constant dense<0.000000e+00> : vector<8x2xf32>
    %64 = tpu.matmul %63, %57, %cst_14 {dimension_numbers = #tpu.dot_dimension_numbers<[1], [0], [0], [1], [0, 0, 1, 1], [], []>} : vector<8x128xf32>, vector<128x2xf32>, vector<8x2xf32> -> vector<8x2xf32>
    %65 = arith.mulf %64, %64 : vector<8x2xf32>
    %cst_15 = arith.constant 2.000000e+00 : f32
    %66 = vector.broadcast %cst_15 : f32 to vector<8x2xf32>
    %67 = arith.mulf %66, %65 : vector<8x2xf32>
    %68 = arith.addf %62, %67 : vector<8x2xf32>
    %69 = arith.mulf %33, %35 : vector<8x128xf32>
    %cst_16 = arith.constant dense<0.000000e+00> : vector<8x2xf32>
    %70 = tpu.matmul %69, %57, %cst_16 {dimension_numbers = #tpu.dot_dimension_numbers<[1], [0], [0], [1], [0, 0, 1, 1], [], []>} : vector<8x128xf32>, vector<128x2xf32>, vector<8x2xf32> -> vector<8x2xf32>
    %71 = arith.mulf %70, %70 : vector<8x2xf32>
    %cst_17 = arith.constant 2.000000e+00 : f32
    %72 = vector.broadcast %cst_17 : f32 to vector<8x2xf32>
    %73 = arith.mulf %72, %71 : vector<8x2xf32>
    %74 = arith.addf %68, %73 : vector<8x2xf32>
    %75 = arith.mulf %33, %36 : vector<8x128xf32>
    %cst_18 = arith.constant dense<0.000000e+00> : vector<8x2xf32>
    %76 = tpu.matmul %75, %57, %cst_18 {dimension_numbers = #tpu.dot_dimension_numbers<[1], [0], [0], [1], [0, 0, 1, 1], [], []>} : vector<8x128xf32>, vector<128x2xf32>, vector<8x2xf32> -> vector<8x2xf32>
    %77 = arith.mulf %76, %76 : vector<8x2xf32>
    %cst_19 = arith.constant 2.000000e+00 : f32
    %78 = vector.broadcast %cst_19 : f32 to vector<8x2xf32>
    %79 = arith.mulf %78, %77 : vector<8x2xf32>
    %80 = arith.addf %74, %79 : vector<8x2xf32>
    %81 = arith.mulf %34, %34 : vector<8x128xf32>
    %cst_20 = arith.constant dense<0.000000e+00> : vector<8x2xf32>
    %82 = tpu.matmul %81, %57, %cst_20 {dimension_numbers = #tpu.dot_dimension_numbers<[1], [0], [0], [1], [0, 0, 1, 1], [], []>} : vector<8x128xf32>, vector<128x2xf32>, vector<8x2xf32> -> vector<8x2xf32>
    %cst_21 = arith.constant 2.000000e+00 : f32
    %83 = vector.broadcast %cst_21 : f32 to vector<8x2xf32>
    %84 = arith.subf %82, %83 : vector<8x2xf32>
    %85 = arith.mulf %82, %84 : vector<8x2xf32>
    %86 = arith.addf %80, %85 : vector<8x2xf32>
    %87 = arith.mulf %34, %35 : vector<8x128xf32>
    %cst_22 = arith.constant dense<0.000000e+00> : vector<8x2xf32>
    %88 = tpu.matmul %87, %57, %cst_22 {dimension_numbers = #tpu.dot_dimension_numbers<[1], [0], [0], [1], [0, 0, 1, 1], [], []>} : vector<8x128xf32>, vector<128x2xf32>, vector<8x2xf32> -> vector<8x2xf32>
    %89 = arith.mulf %88, %88 : vector<8x2xf32>
    %cst_23 = arith.constant 2.000000e+00 : f32
    %90 = vector.broadcast %cst_23 : f32 to vector<8x2xf32>
    %91 = arith.mulf %90, %89 : vector<8x2xf32>
    %92 = arith.addf %86, %91 : vector<8x2xf32>
    %93 = arith.mulf %34, %36 : vector<8x128xf32>
    %cst_24 = arith.constant dense<0.000000e+00> : vector<8x2xf32>
    %94 = tpu.matmul %93, %57, %cst_24 {dimension_numbers = #tpu.dot_dimension_numbers<[1], [0], [0], [1], [0, 0, 1, 1], [], []>} : vector<8x128xf32>, vector<128x2xf32>, vector<8x2xf32> -> vector<8x2xf32>
    %95 = arith.mulf %94, %94 : vector<8x2xf32>
    %cst_25 = arith.constant 2.000000e+00 : f32
    %96 = vector.broadcast %cst_25 : f32 to vector<8x2xf32>
    %97 = arith.mulf %96, %95 : vector<8x2xf32>
    %98 = arith.addf %92, %97 : vector<8x2xf32>
    %99 = arith.mulf %35, %35 : vector<8x128xf32>
    %cst_26 = arith.constant dense<0.000000e+00> : vector<8x2xf32>
    %100 = tpu.matmul %99, %57, %cst_26 {dimension_numbers = #tpu.dot_dimension_numbers<[1], [0], [0], [1], [0, 0, 1, 1], [], []>} : vector<8x128xf32>, vector<128x2xf32>, vector<8x2xf32> -> vector<8x2xf32>
    %cst_27 = arith.constant 2.000000e+00 : f32
    %101 = vector.broadcast %cst_27 : f32 to vector<8x2xf32>
    %102 = arith.subf %100, %101 : vector<8x2xf32>
    %103 = arith.mulf %100, %102 : vector<8x2xf32>
    %104 = arith.addf %98, %103 : vector<8x2xf32>
    %105 = arith.mulf %35, %36 : vector<8x128xf32>
    %cst_28 = arith.constant dense<0.000000e+00> : vector<8x2xf32>
    %106 = tpu.matmul %105, %57, %cst_28 {dimension_numbers = #tpu.dot_dimension_numbers<[1], [0], [0], [1], [0, 0, 1, 1], [], []>} : vector<8x128xf32>, vector<128x2xf32>, vector<8x2xf32> -> vector<8x2xf32>
    %107 = arith.mulf %106, %106 : vector<8x2xf32>
    %cst_29 = arith.constant 2.000000e+00 : f32
    %108 = vector.broadcast %cst_29 : f32 to vector<8x2xf32>
    %109 = arith.mulf %108, %107 : vector<8x2xf32>
    %110 = arith.addf %104, %109 : vector<8x2xf32>
    %111 = arith.mulf %36, %36 : vector<8x128xf32>
    %cst_30 = arith.constant dense<0.000000e+00> : vector<8x2xf32>
    %112 = tpu.matmul %111, %57, %cst_30 {dimension_numbers = #tpu.dot_dimension_numbers<[1], [0], [0], [1], [0, 0, 1, 1], [], []>} : vector<8x128xf32>, vector<128x2xf32>, vector<8x2xf32> -> vector<8x2xf32>
    %cst_31 = arith.constant 2.000000e+00 : f32
    %113 = vector.broadcast %cst_31 : f32 to vector<8x2xf32>
    %114 = arith.subf %112, %113 : vector<8x2xf32>
    %115 = arith.mulf %112, %114 : vector<8x2xf32>
    %116 = arith.addf %110, %115 : vector<8x2xf32>
    %cst_32 = arith.constant dense<0.000000e+00> : vector<2xf32>
    %117 = vector.multi_reduction <add>, %116, %cst_32 [0] : vector<8x2xf32> to vector<2xf32>
    %118 = vector.shape_cast %117 : vector<2xf32> to vector<1x2xf32>
    %cst_33 = arith.constant dense<0.000000e+00> : vector<1xf32>
    %119 = vector.multi_reduction <add>, %118, %cst_33 [1] : vector<1x2xf32> to vector<1xf32>
    %120 = vector.shape_cast %119 : vector<1xf32> to vector<1x1xf32>
    %121 = vector.shape_cast %120 : vector<1x1xf32> to vector<1x1x1xf32>
    %122 = vector.broadcast %121 : vector<1x1x1xf32> to vector<1x1x128xf32>
    %c0_34 = arith.constant 0 : index
    %c0_35 = arith.constant 0 : index
    %c0_36 = arith.constant 0 : index
    %123 = vector.load %arg6[%c0_34, %c0_35, %c0_36] : memref<1x1x128xf32, #tpu.memory_space<vmem>>, vector<1x1x128xf32>
    tpu.vector_store %arg6[%c0_34, %c0_35, %c0_36], %122 {strides = array<i32>} : memref<1x1x128xf32, #tpu.memory_space<vmem>>, vector<1x1x128xf32>,
    return
  }
  func.func @transform_0(%arg0: i32) -> (i32, i32) {
    %c0_i32 = arith.constant 0 : i32
    %c0_i32_0 = arith.constant 0 : i32
    return %arg0, %c0_i32 : i32, i32
  }
  func.func @transform_1(%arg0: i32) -> (i32, i32) {
    %c0_i32 = arith.constant 0 : i32
    %c0_i32_0 = arith.constant 0 : i32
    %c0_i32_1 = arith.constant 0 : i32
    return %c0_i32, %c0_i32_0 : i32, i32
  }
  func.func @transform_2(%arg0: i32) -> (i32, i32) {
    %c0_i32 = arith.constant 0 : i32
    %c0_i32_0 = arith.constant 0 : i32
    %c0_i32_1 = arith.constant 0 : i32
    return %c0_i32, %c0_i32_0 : i32, i32
  }
  func.func @transform_3(%arg0: i32) -> (i32, i32) {
    %c0_i32 = arith.constant 0 : i32
    %c0_i32_0 = arith.constant 0 : i32
    %c0_i32_1 = arith.constant 0 : i32
    return %c0_i32, %c0_i32_0 : i32, i32
  }
  func.func @transform_4(%arg0: i32) -> (i32, i32) {
    %c0_i32 = arith.constant 0 : i32
    %c0_i32_0 = arith.constant 0 : i32
    return %arg0, %c0_i32 : i32, i32
  }
  func.func @transform_5(%arg0: i32) -> (i32, i32, i32) {
    %c0_i32 = arith.constant 0 : i32
    %c0_i32_0 = arith.constant 0 : i32
    %c0_i32_1 = arith.constant 0 : i32
    return %arg0, %c0_i32, %c0_i32_0 : i32, i32, i32
  }
}

</mosaic_0001>

<llo_original>
// kernel: self_atten_forward.1
$region0: #{self_atten_forward.1}
  #allocation0 [shape = 'u32[]', space=smem, size = 0x4, offset = 0x4, fixed_abs, tag = 'smem constant byte address 0x4 - core index']
  #allocation1 [shape = 'u32[144,128]{1,0:T(1,128)}', space=vmem, size = 0x12000, scoped, tag = 'internal scratch']
  %s0 = inlined_call_operand.hbm [shape: f32[8,128], index: 0, kind: input, shape index: {}]
  %s1 = inlined_call_operand.hbm [shape: f32[128,256], index: 1, kind: input, shape index: {}]
  %s2 = inlined_call_operand.hbm [shape: f32[256,512], index: 2, kind: input, shape index: {}]
  %s3 = inlined_call_operand.hbm [shape: f32[128,2], index: 3, kind: input, shape index: {}]
  %s4 = inlined_call_operand.hbm [shape: f32[8,128], index: 4, kind: output, shape index: {0}]
  %s5 = inlined_call_operand.hbm [shape: f32[1,1,128], index: 5, kind: output, shape index: {1}]
  %6 = xla_tuple %s4, %s5
  %s7 = sld [smem:[#allocation0]]
  $region50: #{self_atten_forward.1} parent=0
    _
  %s9 = ssub.s32 1, %s7
  %s10 = scalar_select 0, %s9, %s7
  $region1: #{self_atten_forward.1} parent=0
    #allocation2 [shape = 'u8[4096]{0}', space=vmem, size = 0x1000, scoped, tag = 'input window, operand 0, single buffered']
    #allocation3 [shape = 's32[1]{0}', space=sflag, size = 0x4, scoped, tag = 'scoped memory for self_atten_forward.1']
    #allocation4 [shape = 's32[1]{0}', space=sflag, size = 0x4, scoped, tag = 'scoped memory for self_atten_forward.1']
    #allocation5 [shape = 'u8[131072]{0}', space=vmem, size = 0x20000, scoped, tag = 'input window, operand 1, single buffered']
    #allocation6 [shape = 's32[1]{0}', space=sflag, size = 0x4, scoped, tag = 'scoped memory for self_atten_forward.1']
    #allocation7 [shape = 'u8[524288]{0}', space=vmem, size = 0x80000, scoped, tag = 'input window, operand 2, single buffered']
    #allocation8 [shape = 'u8[65536]{0}', space=vmem, size = 0x10000, scoped, tag = 'input window, operand 3, single buffered']
    #allocation9 [shape = 's32[1]{0}', space=sflag, size = 0x4, scoped, tag = 'scoped memory for self_atten_forward.1']
    #allocation10 [shape = 'u8[4096]{0}', space=vmem, size = 0x1000, scoped, tag = 'output window, operand 0, single buffered']
    #allocation11 [shape = 'u8[512]{0}', space=vmem, size = 0x400, scoped, tag = 'output window, operand 1, single buffered']
    #allocation12 [shape = 's32[1]{0}', space=sflag, size = 0x4, scoped, tag = 'scoped memory for self_atten_forward.1']
    %11 = vsyncpa [#allocation3], 0
    %12 = vsyncpa [#allocation6], 0
    %13 = vsyncpa [#allocation9], 0
    %14 = vsyncpa [#allocation4], 0
    %15 = vsyncpa [#allocation12], 0
    // Predicated region
    $region2: #{self_atten_forward.1} parent=1 // pred_check
      _
    $region3: #{self_atten_forward.1} parent=1 // pred_check_branch
      %17 = sbr.rel (0) target = $region5
    $region4: #{self_atten_forward.1} parent=1 // pred_region
      %s19 = ssub.s32 128, 128
      %20 = vsyncadd [#allocation3], %s19
      %s22 = sshll.u32 [#allocation2], 4
      %s23 = int_to_ptr.vmem [resolvable:$true] %s22
      %25 = dma.hbm_to_vmem [thread:$0]  %s0, 128, %s23, [#allocation3]
    $region5: #{self_atten_forward.1} parent=1 // pred_fallthru
      _
    // Predicated region
    $region6: #{self_atten_forward.1} parent=1 // pred_check
      _
    $region7: #{self_atten_forward.1} parent=1 // pred_check_branch
      %27 = sbr.rel (0) target = $region9
    $region8: #{self_atten_forward.1} parent=1 // pred_region
      %s29 = ssub.s32 4096, 4096
      %30 = vsyncadd [#allocation6], %s29
      %s31 = sshll.u32 [#allocation5], 4
      %s32 = int_to_ptr.vmem [resolvable:$true] %s31
      %37 = dma.hbm_to_vmem [thread:$0]  %s1, 4096, %s32, [#allocation6], 256, 256, 16
    $region9: #{self_atten_forward.1} parent=1 // pred_fallthru
      _
    // Predicated region
    $region10: #{self_atten_forward.1} parent=1 // pred_check
      _
    $region11: #{self_atten_forward.1} parent=1 // pred_check_branch
      %39 = sbr.rel (0) target = $region13
    $region12: #{self_atten_forward.1} parent=1 // pred_region
      %s41 = ssub.s32 16384, 16384
      %42 = vsyncadd [#allocation6], %s41
      %s43 = sshll.u32 [#allocation7], 4
      %s44 = int_to_ptr.vmem [resolvable:$true] %s43
      %49 = dma.hbm_to_vmem [thread:$0]  %s2, 16384, %s44, [#allocation6], 512, 512, 32
    $region13: #{self_atten_forward.1} parent=1 // pred_fallthru
      _
    // Predicated region
    $region14: #{self_atten_forward.1} parent=1 // pred_check
      _
    $region15: #{self_atten_forward.1} parent=1 // pred_check_branch
      %51 = sbr.rel (0) target = $region17
    $region16: #{self_atten_forward.1} parent=1 // pred_region
      %s53 = ssub.s32 2048, 2048
      %54 = vsyncadd [#allocation9], %s53
      %s55 = sshll.u32 [#allocation8], 4
      %s56 = int_to_ptr.vmem [resolvable:$true] %s55
      %61 = dma.hbm_to_vmem [thread:$0]  %s3, 2048, %s56, [#allocation9], 128, 128, 8
    $region17: #{self_atten_forward.1} parent=1 // pred_fallthru
      _
    // Predicated region
    $region18: #{self_atten_forward.1} parent=1 // pred_check
      _
    $region19: #{self_atten_forward.1} parent=1 // pred_check_branch
      %63 = sbr.rel (0) target = $region21
    $region20: #{self_atten_forward.1} parent=1 // pred_region
      %64 = dma.done [#allocation3], 128
    $region21: #{self_atten_forward.1} parent=1 // pred_fallthru
      _
    // Predicated region
    $region22: #{self_atten_forward.1} parent=1 // pred_check
      _
    $region23: #{self_atten_forward.1} parent=1 // pred_check_branch
      %66 = sbr.rel (0) target = $region25
    $region24: #{self_atten_forward.1} parent=1 // pred_region
      %67 = dma.done [#allocation6], 4096
    $region25: #{self_atten_forward.1} parent=1 // pred_fallthru
      _
    // Predicated region
    $region26: #{self_atten_forward.1} parent=1 // pred_check
      _
    $region27: #{self_atten_forward.1} parent=1 // pred_check_branch
      %69 = sbr.rel (0) target = $region29
    $region28: #{self_atten_forward.1} parent=1 // pred_region
      %70 = dma.done [#allocation6], 16384
    $region29: #{self_atten_forward.1} parent=1 // pred_fallthru
      _
    // Predicated region
    $region30: #{self_atten_forward.1} parent=1 // pred_check
      _
    $region31: #{self_atten_forward.1} parent=1 // pred_check_branch
      %72 = sbr.rel (0) target = $region33
    $region32: #{self_atten_forward.1} parent=1 // pred_region
      %73 = dma.done [#allocation9], 2048
    $region33: #{self_atten_forward.1} parent=1 // pred_fallthru
      _
    %v74 = vld [vmem:[#allocation2] sm:$0xff]
    %v75 = vld [vmem:[#allocation5] sm:$0xff]
    %v76 = vld [vmem:[#allocation5 + $0x8] sm:$0xff]
    %v77 = vld [vmem:[#allocation5 + $0x10] sm:$0xff]
    %v78 = vld [vmem:[#allocation5 + $0x18] sm:$0xff]
    %v79 = vld [vmem:[#allocation5 + $0x20] sm:$0xff]
    %v80 = vld [vmem:[#allocation5 + $0x28] sm:$0xff]
    %v81 = vld [vmem:[#allocation5 + $0x30] sm:$0xff]
    %v82 = vld [vmem:[#allocation5 + $0x38] sm:$0xff]
    %v83 = vld [vmem:[#allocation5 + $0x40] sm:$0xff]
    %v84 = vld [vmem:[#allocation5 + $0x48] sm:$0xff]
    %v85 = vld [vmem:[#allocation5 + $0x50] sm:$0xff]
    %v86 = vld [vmem:[#allocation5 + $0x58] sm:$0xff]
    %v87 = vld [vmem:[#allocation5 + $0x60] sm:$0xff]
    %v88 = vld [vmem:[#allocation5 + $0x68] sm:$0xff]
    %v89 = vld [vmem:[#allocation5 + $0x70] sm:$0xff]
    %v90 = vld [vmem:[#allocation5 + $0x78] sm:$0xff]
    %v91 = vld [vmem:[#allocation5 + $0x80] sm:$0xff]
    %v92 = vld [vmem:[#allocation5 + $0x88] sm:$0xff]
    %v93 = vld [vmem:[#allocation5 + $0x90] sm:$0xff]
    %v94 = vld [vmem:[#allocation5 + $0x98] sm:$0xff]
    %v95 = vld [vmem:[#allocation5 + $0xa0] sm:$0xff]
    %v96 = vld [vmem:[#allocation5 + $0xa8] sm:$0xff]
    %v97 = vld [vmem:[#allocation5 + $0xb0] sm:$0xff]
    %v98 = vld [vmem:[#allocation5 + $0xb8] sm:$0xff]
    %v99 = vld [vmem:[#allocation5 + $0xc0] sm:$0xff]
    %v100 = vld [vmem:[#allocation5 + $0xc8] sm:$0xff]
    %v101 = vld [vmem:[#allocation5 + $0xd0] sm:$0xff]
    %v102 = vld [vmem:[#allocation5 + $0xd8] sm:$0xff]
    %v103 = vld [vmem:[#allocation5 + $0xe0] sm:$0xff]
    %v104 = vld [vmem:[#allocation5 + $0xe8] sm:$0xff]
    %v105 = vld [vmem:[#allocation5 + $0xf0] sm:$0xff]
    %v106 = vld [vmem:[#allocation5 + $0xf8] sm:$0xff]
    %107 = vmatprep.subr.mxu0 %v76
    %108 = vmatpush1.msra.mxu0 %v75
    %109 = vmatprep.subr.mxu0 %v78
    %110 = vmatpush1.msra.mxu0 %v77
    %111 = vmatprep.subr.mxu0 %v80
    %112 = vmatpush1.msra.mxu0 %v79
    %113 = vmatprep.subr.mxu0 %v82
    %114 = vmatpush1.msra.mxu0 %v81
    %115 = vmatprep.subr.mxu0 %v84
    %116 = vmatpush1.msra.mxu0 %v83
    %117 = vmatprep.subr.mxu0 %v86
    %118 = vmatpush1.msra.mxu0 %v85
    %119 = vmatprep.subr.mxu0 %v88
    %120 = vmatpush1.msra.mxu0 %v87
    %121 = vmatprep.subr.mxu0 %v90
    %122 = vmatpush1.msra.mxu0 %v89
    %123 = vmatprep.subr.mxu0 %v92
    %124 = vmatpush1.msra.mxu0 %v91
    %125 = vmatprep.subr.mxu0 %v94
    %126 = vmatpush1.msra.mxu0 %v93
    %127 = vmatprep.subr.mxu0 %v96
    %128 = vmatpush1.msra.mxu0 %v95
    %129 = vmatprep.subr.mxu0 %v98
    %130 = vmatpush1.msra.mxu0 %v97
    %131 = vmatprep.subr.mxu0 %v100
    %132 = vmatpush1.msra.mxu0 %v99
    %133 = vmatprep.subr.mxu0 %v102
    %134 = vmatpush1.msra.mxu0 %v101
    %135 = vmatprep.subr.mxu0 %v104
    %136 = vmatpush1.msra.mxu0 %v103
    %137 = vmatprep.subr.mxu0 %v106
    %138 = vmatpush1.msra.mxu0 %v105
    %139 = vmatprep.subr.mxu0 0.0
    %140 = vmatpush1.msra.mxu0 0.0
    %141 = vmatprep.subr.mxu0 0.0
    %142 = vmatpush1.msra.mxu0 0.0
    %143 = vmatprep.subr.mxu0 0.0
    %144 = vmatpush1.msra.mxu0 0.0
    %145 = vmatprep.subr.mxu0 0.0
    %146 = vmatpush1.msra.mxu0 0.0
    %147 = vmatprep.subr.mxu0 0.0
    %148 = vmatpush1.msra.mxu0 0.0
    %149 = vmatprep.subr.mxu0 0.0
    %150 = vmatpush1.msra.mxu0 0.0
    %151 = vmatprep.subr.mxu0 0.0
    %152 = vmatpush1.msra.mxu0 0.0
    %153 = vmatprep.subr.mxu0 0.0
    %154 = vmatpush1.msra.mxu0 0.0
    %155 = vmatprep.subr.mxu0 0.0
    %156 = vmatpush1.msra.mxu0 0.0
    %157 = vmatprep.subr.mxu0 0.0
    %158 = vmatpush1.msra.mxu0 0.0
    %159 = vmatprep.subr.mxu0 0.0
    %160 = vmatpush1.msra.mxu0 0.0
    %161 = vmatprep.subr.mxu0 0.0
    %162 = vmatpush1.msra.mxu0 0.0
    %163 = vmatprep.subr.mxu0 0.0
    %164 = vmatpush1.msra.mxu0 0.0
    %165 = vmatprep.subr.mxu0 0.0
    %166 = vmatpush1.msra.mxu0 0.0
    %167 = vmatprep.subr.mxu0 0.0
    %168 = vmatpush1.msra.mxu0 0.0
    %169 = vmatprep.subr.mxu0 0.0
    %170 = vmatpush1.msra.mxu0 0.0
    %171 = vmatprep.mubr.f32.mxu0 0.0
    %172 = vmatmul.mubr.f32.gmra.mrb[0].mxu0 %v74
    %v173 = vpop.f32.mrb[0].mxu0
    %v174 = vadd.f32 0.0, %v173
    %v175 = vpop.f32.mrb[0].mxu0
    %v176 = vadd.f32 0.0, %v175
    %177 = vdwg.mxu0
    %v178 = vtanh.pop %v174
    %v179 = vtanh.pop %v176
    %v180 = vld [vmem:[#allocation7] sm:$0xff]
    %v181 = vld [vmem:[#allocation7 + $0x8] sm:$0xff]
    %v182 = vld [vmem:[#allocation7 + $0x10] sm:$0xff]
    %v183 = vld [vmem:[#allocation7 + $0x18] sm:$0xff]
    %v184 = vld [vmem:[#allocation7 + $0x20] sm:$0xff]
    %v185 = vld [vmem:[#allocation7 + $0x28] sm:$0xff]
    %v186 = vld [vmem:[#allocation7 + $0x30] sm:$0xff]
    %v187 = vld [vmem:[#allocation7 + $0x38] sm:$0xff]
    %v188 = vld [vmem:[#allocation7 + $0x40] sm:$0xff]
    %v189 = vld [vmem:[#allocation7 + $0x48] sm:$0xff]
    %v190 = vld [vmem:[#allocation7 + $0x50] sm:$0xff]
    %v191 = vld [vmem:[#allocation7 + $0x58] sm:$0xff]
    %v192 = vld [vmem:[#allocation7 + $0x60] sm:$0xff]
    %v193 = vld [vmem:[#allocation7 + $0x68] sm:$0xff]
    %v194 = vld [vmem:[#allocation7 + $0x70] sm:$0xff]
    %v195 = vld [vmem:[#allocation7 + $0x78] sm:$0xff]
    %v196 = vld [vmem:[#allocation7 + $0x80] sm:$0xff]
    %v197 = vld [vmem:[#allocation7 + $0x88] sm:$0xff]
    %v198 = vld [vmem:[#allocation7 + $0x90] sm:$0xff]
    %v199 = vld [vmem:[#allocation7 + $0x98] sm:$0xff]
    %v200 = vld [vmem:[#allocation7 + $0xa0] sm:$0xff]
    %v201 = vld [vmem:[#allocation7 + $0xa8] sm:$0xff]
    %v202 = vld [vmem:[#allocation7 + $0xb0] sm:$0xff]
    %v203 = vld [vmem:[#allocation7 + $0xb8] sm:$0xff]
    %v204 = vld [vmem:[#allocation7 + $0xc0] sm:$0xff]
    %v205 = vld [vmem:[#allocation7 + $0xc8] sm:$0xff]
    %v206 = vld [vmem:[#allocation7 + $0xd0] sm:$0xff]
    %v207 = vld [vmem:[#allocation7 + $0xd8] sm:$0xff]
    %v208 = vld [vmem:[#allocation7 + $0xe0] sm:$0xff]
    %v209 = vld [vmem:[#allocation7 + $0xe8] sm:$0xff]
    %v210 = vld [vmem:[#allocation7 + $0xf0] sm:$0xff]
    %v211 = vld [vmem:[#allocation7 + $0xf8] sm:$0xff]
    %v212 = vld [vmem:[#allocation7 + $0x100] sm:$0xff]
    %v213 = vld [vmem:[#allocation7 + $0x108] sm:$0xff]
    %v214 = vld [vmem:[#allocation7 + $0x110] sm:$0xff]
    %v215 = vld [vmem:[#allocation7 + $0x118] sm:$0xff]
    %v216 = vld [vmem:[#allocation7 + $0x120] sm:$0xff]
    %v217 = vld [vmem:[#allocation7 + $0x128] sm:$0xff]
    %v218 = vld [vmem:[#allocation7 + $0x130] sm:$0xff]
    %v219 = vld [vmem:[#allocation7 + $0x138] sm:$0xff]
    %v220 = vld [vmem:[#allocation7 + $0x140] sm:$0xff]
    %v221 = vld [vmem:[#allocation7 + $0x148] sm:$0xff]
    %v222 = vld [vmem:[#allocation7 + $0x150] sm:$0xff]
    %v223 = vld [vmem:[#allocation7 + $0x158] sm:$0xff]
    %v224 = vld [vmem:[#allocation7 + $0x160] sm:$0xff]
    %v225 = vld [vmem:[#allocation7 + $0x168] sm:$0xff]
    %v226 = vld [vmem:[#allocation7 + $0x170] sm:$0xff]
    %v227 = vld [vmem:[#allocation7 + $0x178] sm:$0xff]
    %v228 = vld [vmem:[#allocation7 + $0x180] sm:$0xff]
    %v229 = vld [vmem:[#allocation7 + $0x188] sm:$0xff]
    %v230 = vld [vmem:[#allocation7 + $0x190] sm:$0xff]
    %v231 = vld [vmem:[#allocation7 + $0x198] sm:$0xff]
    %v232 = vld [vmem:[#allocation7 + $0x1a0] sm:$0xff]
    %v233 = vld [vmem:[#allocation7 + $0x1a8] sm:$0xff]
    %v234 = vld [vmem:[#allocation7 + $0x1b0] sm:$0xff]
    %v235 = vld [vmem:[#allocation7 + $0x1b8] sm:$0xff]
    %v236 = vld [vmem:[#allocation7 + $0x1c0] sm:$0xff]
    %v237 = vld [vmem:[#allocation7 + $0x1c8] sm:$0xff]
    %v238 = vld [vmem:[#allocation7 + $0x1d0] sm:$0xff]
    %v239 = vld [vmem:[#allocation7 + $0x1d8] sm:$0xff]
    %v240 = vld [vmem:[#allocation7 + $0x1e0] sm:$0xff]
    %v241 = vld [vmem:[#allocation7 + $0x1e8] sm:$0xff]
    %v242 = vld [vmem:[#allocation7 + $0x1f0] sm:$0xff]
    %v243 = vld [vmem:[#allocation7 + $0x1f8] sm:$0xff]
    %v244 = vld [vmem:[#allocation7 + $0x200] sm:$0xff]
    %v245 = vld [vmem:[#allocation7 + $0x208] sm:$0xff]
    %v246 = vld [vmem:[#allocation7 + $0x210] sm:$0xff]
    %v247 = vld [vmem:[#allocation7 + $0x218] sm:$0xff]
    %v248 = vld [vmem:[#allocation7 + $0x220] sm:$0xff]
    %v249 = vld [vmem:[#allocation7 + $0x228] sm:$0xff]
    %v250 = vld [vmem:[#allocation7 + $0x230] sm:$0xff]
    %v251 = vld [vmem:[#allocation7 + $0x238] sm:$0xff]
    %v252 = vld [vmem:[#allocation7 + $0x240] sm:$0xff]
    %v253 = vld [vmem:[#allocation7 + $0x248] sm:$0xff]
    %v254 = vld [vmem:[#allocation7 + $0x250] sm:$0xff]
    %v255 = vld [vmem:[#allocation7 + $0x258] sm:$0xff]
    %v256 = vld [vmem:[#allocation7 + $0x260] sm:$0xff]
    %v257 = vld [vmem:[#allocation7 + $0x268] sm:$0xff]
    %v258 = vld [vmem:[#allocation7 + $0x270] sm:$0xff]
    %v259 = vld [vmem:[#allocation7 + $0x278] sm:$0xff]
    %v260 = vld [vmem:[#allocation7 + $0x280] sm:$0xff]
    %v261 = vld [vmem:[#allocation7 + $0x288] sm:$0xff]
    %v262 = vld [vmem:[#allocation7 + $0x290] sm:$0xff]
    %v263 = vld [vmem:[#allocation7 + $0x298] sm:$0xff]
    %v264 = vld [vmem:[#allocation7 + $0x2a0] sm:$0xff]
    %v265 = vld [vmem:[#allocation7 + $0x2a8] sm:$0xff]
    %v266 = vld [vmem:[#allocation7 + $0x2b0] sm:$0xff]
    %v267 = vld [vmem:[#allocation7 + $0x2b8] sm:$0xff]
    %v268 = vld [vmem:[#allocation7 + $0x2c0] sm:$0xff]
    %v269 = vld [vmem:[#allocation7 + $0x2c8] sm:$0xff]
    %v270 = vld [vmem:[#allocation7 + $0x2d0] sm:$0xff]
    %v271 = vld [vmem:[#allocation7 + $0x2d8] sm:$0xff]
    %v272 = vld [vmem:[#allocation7 + $0x2e0] sm:$0xff]
    %v273 = vld [vmem:[#allocation7 + $0x2e8] sm:$0xff]
    %v274 = vld [vmem:[#allocation7 + $0x2f0] sm:$0xff]
    %v275 = vld [vmem:[#allocation7 + $0x2f8] sm:$0xff]
    %v276 = vld [vmem:[#allocation7 + $0x300] sm:$0xff]
    %v277 = vld [vmem:[#allocation7 + $0x308] sm:$0xff]
    %v278 = vld [vmem:[#allocation7 + $0x310] sm:$0xff]
    %v279 = vld [vmem:[#allocation7 + $0x318] sm:$0xff]
    %v280 = vld [vmem:[#allocation7 + $0x320] sm:$0xff]
    %v281 = vld [vmem:[#allocation7 + $0x328] sm:$0xff]
    %v282 = vld [vmem:[#allocation7 + $0x330] sm:$0xff]
    %v283 = vld [vmem:[#allocation7 + $0x338] sm:$0xff]
    %v284 = vld [vmem:[#allocation7 + $0x340] sm:$0xff]
    %v285 = vld [vmem:[#allocation7 + $0x348] sm:$0xff]
    %v286 = vld [vmem:[#allocation7 + $0x350] sm:$0xff]
    %v287 = vld [vmem:[#allocation7 + $0x358] sm:$0xff]
    %v288 = vld [vmem:[#allocation7 + $0x360] sm:$0xff]
    %v289 = vld [vmem:[#allocation7 + $0x368] sm:$0xff]
    %v290 = vld [vmem:[#allocation7 + $0x370] sm:$0xff]
    %v291 = vld [vmem:[#allocation7 + $0x378] sm:$0xff]
    %v292 = vld [vmem:[#allocation7 + $0x380] sm:$0xff]
    %v293 = vld [vmem:[#allocation7 + $0x388] sm:$0xff]
    %v294 = vld [vmem:[#allocation7 + $0x390] sm:$0xff]
    %v295 = vld [vmem:[#allocation7 + $0x398] sm:$0xff]
    %v296 = vld [vmem:[#allocation7 + $0x3a0] sm:$0xff]
    %v297 = vld [vmem:[#allocation7 + $0x3a8] sm:$0xff]
    %v298 = vld [vmem:[#allocation7 + $0x3b0] sm:$0xff]
    %v299 = vld [vmem:[#allocation7 + $0x3b8] sm:$0xff]
    %v300 = vld [vmem:[#allocation7 + $0x3c0] sm:$0xff]
    %v301 = vld [vmem:[#allocation7 + $0x3c8] sm:$0xff]
    %v302 = vld [vmem:[#allocation7 + $0x3d0] sm:$0xff]
    %v303 = vld [vmem:[#allocation7 + $0x3d8] sm:$0xff]
    %v304 = vld [vmem:[#allocation7 + $0x3e0] sm:$0xff]
    %v305 = vld [vmem:[#allocation7 + $0x3e8] sm:$0xff]
    %v306 = vld [vmem:[#allocation7 + $0x3f0] sm:$0xff]
    %v307 = vld [vmem:[#allocation7 + $0x3f8] sm:$0xff]
    %308 = vmatprep.subr.mxu0 %v181
    %309 = vmatpush1.msra.mxu0 %v180
    %310 = vmatprep.subr.mxu0 %v185
    %311 = vmatpush1.msra.mxu0 %v184
    %312 = vmatprep.subr.mxu0 %v189
    %313 = vmatpush1.msra.mxu0 %v188
    %314 = vmatprep.subr.mxu0 %v193
    %315 = vmatpush1.msra.mxu0 %v192
    %316 = vmatprep.subr.mxu0 %v197
    %317 = vmatpush1.msra.mxu0 %v196
    %318 = vmatprep.subr.mxu0 %v201
    %319 = vmatpush1.msra.mxu0 %v200
    %320 = vmatprep.subr.mxu0 %v205
    %321 = vmatpush1.msra.mxu0 %v204
    %322 = vmatprep.subr.mxu0 %v209
    %323 = vmatpush1.msra.mxu0 %v208
    %324 = vmatprep.subr.mxu0 %v213
    %325 = vmatpush1.msra.mxu0 %v212
    %326 = vmatprep.subr.mxu0 %v217
    %327 = vmatpush1.msra.mxu0 %v216
    %328 = vmatprep.subr.mxu0 %v221
    %329 = vmatpush1.msra.mxu0 %v220
    %330 = vmatprep.subr.mxu0 %v225
    %331 = vmatpush1.msra.mxu0 %v224
    %332 = vmatprep.subr.mxu0 %v229
    %333 = vmatpush1.msra.mxu0 %v228
    %334 = vmatprep.subr.mxu0 %v233
    %335 = vmatpush1.msra.mxu0 %v232
    %336 = vmatprep.subr.mxu0 %v237
    %337 = vmatpush1.msra.mxu0 %v236
    %338 = vmatprep.subr.mxu0 %v241
    %339 = vmatpush1.msra.mxu0 %v240
    %340 = vmatprep.subr.mxu0 %v245
    %341 = vmatpush1.msra.mxu0 %v244
    %342 = vmatprep.subr.mxu0 %v249
    %343 = vmatpush1.msra.mxu0 %v248
    %344 = vmatprep.subr.mxu0 %v253
    %345 = vmatpush1.msra.mxu0 %v252
    %346 = vmatprep.subr.mxu0 %v257
    %347 = vmatpush1.msra.mxu0 %v256
    %348 = vmatprep.subr.mxu0 %v261
    %349 = vmatpush1.msra.mxu0 %v260
    %350 = vmatprep.subr.mxu0 %v265
    %351 = vmatpush1.msra.mxu0 %v264
    %352 = vmatprep.subr.mxu0 %v269
    %353 = vmatpush1.msra.mxu0 %v268
    %354 = vmatprep.subr.mxu0 %v273
    %355 = vmatpush1.msra.mxu0 %v272
    %356 = vmatprep.subr.mxu0 %v277
    %357 = vmatpush1.msra.mxu0 %v276
    %358 = vmatprep.subr.mxu0 %v281
    %359 = vmatpush1.msra.mxu0 %v280
    %360 = vmatprep.subr.mxu0 %v285
    %361 = vmatpush1.msra.mxu0 %v284
    %362 = vmatprep.subr.mxu0 %v289
    %363 = vmatpush1.msra.mxu0 %v288
    %364 = vmatprep.subr.mxu0 %v293
    %365 = vmatpush1.msra.mxu0 %v292
    %366 = vmatprep.subr.mxu0 %v297
    %367 = vmatpush1.msra.mxu0 %v296
    %368 = vmatprep.subr.mxu0 %v301
    %369 = vmatpush1.msra.mxu0 %v300
    %370 = vmatprep.subr.mxu0 %v305
    %371 = vmatpush1.msra.mxu0 %v304
    %372 = vmatprep.mubr.f32.mxu0 %v179
    %373 = vmatmul.mubr.f32.gmra.mrb[0].mxu0 %v178
    %v374 = vpop.f32.mrb[0].mxu0
    %v375 = vadd.f32 0.0, %v374
    %v376 = vpop.f32.mrb[0].mxu0
    %v377 = vadd.f32 0.0, %v376
    %378 = vdwg.mxu0
    %379 = vmatprep.subr.mxu0 %v183
    %380 = vmatpush1.msra.mxu0 %v182
    %381 = vmatprep.subr.mxu0 %v187
    %382 = vmatpush1.msra.mxu0 %v186
    %383 = vmatprep.subr.mxu0 %v191
    %384 = vmatpush1.msra.mxu0 %v190
    %385 = vmatprep.subr.mxu0 %v195
    %386 = vmatpush1.msra.mxu0 %v194
    %387 = vmatprep.subr.mxu0 %v199
    %388 = vmatpush1.msra.mxu0 %v198
    %389 = vmatprep.subr.mxu0 %v203
    %390 = vmatpush1.msra.mxu0 %v202
    %391 = vmatprep.subr.mxu0 %v207
    %392 = vmatpush1.msra.mxu0 %v206
    %393 = vmatprep.subr.mxu0 %v211
    %394 = vmatpush1.msra.mxu0 %v210
    %395 = vmatprep.subr.mxu0 %v215
    %396 = vmatpush1.msra.mxu0 %v214
    %397 = vmatprep.subr.mxu0 %v219
    %398 = vmatpush1.msra.mxu0 %v218
    %399 = vmatprep.subr.mxu0 %v223
    %400 = vmatpush1.msra.mxu0 %v222
    %401 = vmatprep.subr.mxu0 %v227
    %402 = vmatpush1.msra.mxu0 %v226
    %403 = vmatprep.subr.mxu0 %v231
    %404 = vmatpush1.msra.mxu0 %v230
    %405 = vmatprep.subr.mxu0 %v235
    %406 = vmatpush1.msra.mxu0 %v234
    %407 = vmatprep.subr.mxu0 %v239
    %408 = vmatpush1.msra.mxu0 %v238
    %409 = vmatprep.subr.mxu0 %v243
    %410 = vmatpush1.msra.mxu0 %v242
    %411 = vmatprep.subr.mxu0 %v247
    %412 = vmatpush1.msra.mxu0 %v246
    %413 = vmatprep.subr.mxu0 %v251
    %414 = vmatpush1.msra.mxu0 %v250
    %415 = vmatprep.subr.mxu0 %v255
    %416 = vmatpush1.msra.mxu0 %v254
    %417 = vmatprep.subr.mxu0 %v259
    %418 = vmatpush1.msra.mxu0 %v258
    %419 = vmatprep.subr.mxu0 %v263
    %420 = vmatpush1.msra.mxu0 %v262
    %421 = vmatprep.subr.mxu0 %v267
    %422 = vmatpush1.msra.mxu0 %v266
    %423 = vmatprep.subr.mxu0 %v271
    %424 = vmatpush1.msra.mxu0 %v270
    %425 = vmatprep.subr.mxu0 %v275
    %426 = vmatpush1.msra.mxu0 %v274
    %427 = vmatprep.subr.mxu0 %v279
    %428 = vmatpush1.msra.mxu0 %v278
    %429 = vmatprep.subr.mxu0 %v283
    %430 = vmatpush1.msra.mxu0 %v282
    %431 = vmatprep.subr.mxu0 %v287
    %432 = vmatpush1.msra.mxu0 %v286
    %433 = vmatprep.subr.mxu0 %v291
    %434 = vmatpush1.msra.mxu0 %v290
    %435 = vmatprep.subr.mxu0 %v295
    %436 = vmatpush1.msra.mxu0 %v294
    %437 = vmatprep.subr.mxu0 %v299
    %438 = vmatpush1.msra.mxu0 %v298
    %439 = vmatprep.subr.mxu0 %v303
    %440 = vmatpush1.msra.mxu0 %v302
    %441 = vmatprep.subr.mxu0 %v307
    %442 = vmatpush1.msra.mxu0 %v306
    %443 = vmatprep.mubr.f32.mxu0 %v179
    %444 = vmatmul.mubr.f32.gmra.mrb[0].mxu0 %v178
    %v445 = vpop.f32.mrb[0].mxu0
    %v446 = vadd.f32 0.0, %v445
    %v447 = vpop.f32.mrb[0].mxu0
    %v448 = vadd.f32 0.0, %v447
    %449 = vdwg.mxu0
    %v450 = vmax.f32 %v375, %v377
    %v451 = vmax.f32 %v450, %v446
    %v452 = vmax.f32 %v451, %v448
    %v453 = vsub.f32 %v375, %v452
    %v454 = vmul.f32 %v453, 1.442695
    %v455 = vpow.pop %v454
    %v456 = vsub.f32 %v377, %v452
    %v457 = vmul.f32 %v456, 1.442695
    %v458 = vpow.pop %v457
    %v459 = vsub.f32 %v446, %v452
    %v460 = vmul.f32 %v459, 1.442695
    %v461 = vpow.pop %v460
    %v462 = vsub.f32 %v448, %v452
    %v463 = vmul.f32 %v462, 1.442695
    %v464 = vpow.pop %v463
    %v465 = vadd.f32 %v455, %v458
    %v466 = vadd.f32 %v465, %v461
    %v467 = vadd.f32 %v466, %v464
    %v468 = vrcp.pop %v467
    %v469 = vmul.f32 %v467, %v468
    %v470 = vsub.f32 2.0, %v469
    %v471 = vmul.f32 %v468, %v470
    %v472 = vmul.f32 %v467, %v471
    %v473 = vsub.f32 2.0, %v472
    %v474 = vmul.f32 %v471, %v473
    %v475 = vmul.f32 %v455, %v474
    %v476 = vmul.f32 %v458, %v474
    %v477 = vmul.f32 %v461, %v474
    %v478 = vmul.f32 %v464, %v474
    %480 = vrot.lane.b32.xlu0 %v74, 16
    %v481 = vpop.permute.xlu0 %480
    %483 = vrot.lane.b32.xlu0 %v74, 32
    %v484 = vpop.permute.xlu0 %483
    %486 = vrot.lane.b32.xlu0 %v74, 48
    %v487 = vpop.permute.xlu0 %486
    %vm489 = vcmask 130048
    %v490 = vsel %vm489, %v74, %v481
    %vm491 = vcmask 261120
    %v492 = vsel %vm491, %v490, %v484
    %vm493 = vcmask 392192
    %v494 = vsel %vm493, %v492, %v487
    %vm495 = vcmask 523264
    %v496 = vsel %vm495, %v494, %v74
    %vm497 = vcmask 654336
    %v498 = vsel %vm497, %v496, %v481
    %vm499 = vcmask 785408
    %v500 = vsel %vm499, %v498, %v484
    %vm501 = vcmask 916480
    %v502 = vsel %vm501, %v500, %v487
    %v503 = vmul.f32 %v475, %v502
    %504 = vrot.lane.b32.xlu0 %v74, 112
    %v505 = vpop.permute.xlu0 %504
    %v507 = vsel %vm489, %v505, %v74
    %v508 = vsel %vm491, %v507, %v481
    %v509 = vsel %vm493, %v508, %v484
    %v510 = vsel %vm495, %v509, %v505
    %v511 = vsel %vm497, %v510, %v74
    %v512 = vsel %vm499, %v511, %v481
    %v513 = vsel %vm501, %v512, %v484
    %v514 = vmul.f32 %v476, %v513
    %v515 = vadd.f32 %v503, %v514
    %516 = vrot.lane.b32.xlu0 %v74, 96
    %v517 = vpop.permute.xlu0 %516
    %v519 = vsel %vm489, %v517, %v505
    %v520 = vsel %vm491, %v519, %v74
    %v521 = vsel %vm493, %v520, %v481
    %v522 = vsel %vm495, %v521, %v517
    %v523 = vsel %vm497, %v522, %v505
    %v524 = vsel %vm499, %v523, %v74
    %v525 = vsel %vm501, %v524, %v481
    %v526 = vmul.f32 %v477, %v525
    %v527 = vadd.f32 %v515, %v526
    %528 = vrot.lane.b32.xlu0 %v74, 80
    %v529 = vpop.permute.xlu0 %528
    %v531 = vsel %vm489, %v529, %v517
    %v532 = vsel %vm491, %v531, %v505
    %v533 = vsel %vm493, %v532, %v74
    %v534 = vsel %vm495, %v533, %v529
    %v535 = vsel %vm497, %v534, %v517
    %v536 = vsel %vm499, %v535, %v505
    %v537 = vsel %vm501, %v536, %v74
    %v538 = vmul.f32 %v478, %v537
    %v539 = vadd.f32 %v527, %v538
    %540 = vst [vmem:[#allocation10] sm:$0xff] %v539
    %v541 = vld [vmem:[#allocation8] sm:$0xff]
    %v542 = vld [vmem:[#allocation8 + $0x8] sm:$0xff]
    %v543 = vld [vmem:[#allocation8 + $0x10] sm:$0xff]
    %v544 = vld [vmem:[#allocation8 + $0x18] sm:$0xff]
    %v545 = vld [vmem:[#allocation8 + $0x20] sm:$0xff]
    %v546 = vld [vmem:[#allocation8 + $0x28] sm:$0xff]
    %v547 = vld [vmem:[#allocation8 + $0x30] sm:$0xff]
    %v548 = vld [vmem:[#allocation8 + $0x38] sm:$0xff]
    %v549 = vld [vmem:[#allocation8 + $0x40] sm:$0xff]
    %v550 = vld [vmem:[#allocation8 + $0x48] sm:$0xff]
    %v551 = vld [vmem:[#allocation8 + $0x50] sm:$0xff]
    %v552 = vld [vmem:[#allocation8 + $0x58] sm:$0xff]
    %v553 = vld [vmem:[#allocation8 + $0x60] sm:$0xff]
    %v554 = vld [vmem:[#allocation8 + $0x68] sm:$0xff]
    %v555 = vld [vmem:[#allocation8 + $0x70] sm:$0xff]
    %v556 = vld [vmem:[#allocation8 + $0x78] sm:$0xff]
    %v557 = vmul.f32 %v475, %v475
    %558 = vmatprep.subr.mxu0 0.0
    %559 = vmatpush1.msra.mxu0 %v541
    %560 = vmatprep.subr.mxu0 0.0
    %561 = vmatpush1.msra.mxu0 %v542
    %562 = vmatprep.subr.mxu0 0.0
    %563 = vmatpush1.msra.mxu0 %v543
    %564 = vmatprep.subr.mxu0 0.0
    %565 = vmatpush1.msra.mxu0 %v544
    %566 = vmatprep.subr.mxu0 0.0
    %567 = vmatpush1.msra.mxu0 %v545
    %568 = vmatprep.subr.mxu0 0.0
    %569 = vmatpush1.msra.mxu0 %v546
    %570 = vmatprep.subr.mxu0 0.0
    %571 = vmatpush1.msra.mxu0 %v547
    %572 = vmatprep.subr.mxu0 0.0
    %573 = vmatpush1.msra.mxu0 %v548
    %574 = vmatprep.subr.mxu0 0.0
    %575 = vmatpush1.msra.mxu0 %v549
    %576 = vmatprep.subr.mxu0 0.0
    %577 = vmatpush1.msra.mxu0 %v550
    %578 = vmatprep.subr.mxu0 0.0
    %579 = vmatpush1.msra.mxu0 %v551
    %580 = vmatprep.subr.mxu0 0.0
    %581 = vmatpush1.msra.mxu0 %v552
    %582 = vmatprep.subr.mxu0 0.0
    %583 = vmatpush1.msra.mxu0 %v553
    %584 = vmatprep.subr.mxu0 0.0
    %585 = vmatpush1.msra.mxu0 %v554
    %586 = vmatprep.subr.mxu0 0.0
    %587 = vmatpush1.msra.mxu0 %v555
    %588 = vmatprep.subr.mxu0 0.0
    %589 = vmatpush1.msra.mxu0 %v556
    %590 = vmatprep.subr.mxu0 0.0
    %591 = vmatpush1.msra.mxu0 0.0
    %592 = vmatprep.subr.mxu0 0.0
    %593 = vmatpush1.msra.mxu0 0.0
    %594 = vmatprep.subr.mxu0 0.0
    %595 = vmatpush1.msra.mxu0 0.0
    %596 = vmatprep.subr.mxu0 0.0
    %597 = vmatpush1.msra.mxu0 0.0
    %598 = vmatprep.subr.mxu0 0.0
    %599 = vmatpush1.msra.mxu0 0.0
    %600 = vmatprep.subr.mxu0 0.0
    %601 = vmatpush1.msra.mxu0 0.0
    %602 = vmatprep.subr.mxu0 0.0
    %603 = vmatpush1.msra.mxu0 0.0
    %604 = vmatprep.subr.mxu0 0.0
    %605 = vmatpush1.msra.mxu0 0.0
    %606 = vmatprep.subr.mxu0 0.0
    %607 = vmatpush1.msra.mxu0 0.0
    %608 = vmatprep.subr.mxu0 0.0
    %609 = vmatpush1.msra.mxu0 0.0
    %610 = vmatprep.subr.mxu0 0.0
    %611 = vmatpush1.msra.mxu0 0.0
    %612 = vmatprep.subr.mxu0 0.0
    %613 = vmatpush1.msra.mxu0 0.0
    %614 = vmatprep.subr.mxu0 0.0
    %615 = vmatpush1.msra.mxu0 0.0
    %616 = vmatprep.subr.mxu0 0.0
    %617 = vmatpush1.msra.mxu0 0.0
    %618 = vmatprep.subr.mxu0 0.0
    %619 = vmatpush1.msra.mxu0 0.0
    %620 = vmatprep.subr.mxu0 0.0
    %621 = vmatpush1.msra.mxu0 0.0
    %622 = vmatprep.mubr.f32.mxu0 0.0
    %623 = vmatmul.mubr.f32.gmra.mrb[0].mxu0 %v557
    %v624 = vpop.f32.mrb[0].mxu0
    %v625 = vadd.f32 0.0, %v624
    %v626 = vpop.f32.mrb[0].mxu0
    %627 = vdwg.mxu0
    %v628 = vsub.f32 %v625, 2.0
    %v629 = vmul.f32 %v625, %v628
    %v630 = vmul.f32 %v475, %v476
    %631 = vmatprep.subr.mxu0 0.0
    %632 = vmatpush1.msra.mxu0 %v541
    %633 = vmatprep.subr.mxu0 0.0
    %634 = vmatpush1.msra.mxu0 %v542
    %635 = vmatprep.subr.mxu0 0.0
    %636 = vmatpush1.msra.mxu0 %v543
    %637 = vmatprep.subr.mxu0 0.0
    %638 = vmatpush1.msra.mxu0 %v544
    %639 = vmatprep.subr.mxu0 0.0
    %640 = vmatpush1.msra.mxu0 %v545
    %641 = vmatprep.subr.mxu0 0.0
    %642 = vmatpush1.msra.mxu0 %v546
    %643 = vmatprep.subr.mxu0 0.0
    %644 = vmatpush1.msra.mxu0 %v547
    %645 = vmatprep.subr.mxu0 0.0
    %646 = vmatpush1.msra.mxu0 %v548
    %647 = vmatprep.subr.mxu0 0.0
    %648 = vmatpush1.msra.mxu0 %v549
    %649 = vmatprep.subr.mxu0 0.0
    %650 = vmatpush1.msra.mxu0 %v550
    %651 = vmatprep.subr.mxu0 0.0
    %652 = vmatpush1.msra.mxu0 %v551
    %653 = vmatprep.subr.mxu0 0.0
    %654 = vmatpush1.msra.mxu0 %v552
    %655 = vmatprep.subr.mxu0 0.0
    %656 = vmatpush1.msra.mxu0 %v553
    %657 = vmatprep.subr.mxu0 0.0
    %658 = vmatpush1.msra.mxu0 %v554
    %659 = vmatprep.subr.mxu0 0.0
    %660 = vmatpush1.msra.mxu0 %v555
    %661 = vmatprep.subr.mxu0 0.0
    %662 = vmatpush1.msra.mxu0 %v556
    %663 = vmatprep.subr.mxu0 0.0
    %664 = vmatpush1.msra.mxu0 0.0
    %665 = vmatprep.subr.mxu0 0.0
    %666 = vmatpush1.msra.mxu0 0.0
    %667 = vmatprep.subr.mxu0 0.0
    %668 = vmatpush1.msra.mxu0 0.0
    %669 = vmatprep.subr.mxu0 0.0
    %670 = vmatpush1.msra.mxu0 0.0
    %671 = vmatprep.subr.mxu0 0.0
    %672 = vmatpush1.msra.mxu0 0.0
    %673 = vmatprep.subr.mxu0 0.0
    %674 = vmatpush1.msra.mxu0 0.0
    %675 = vmatprep.subr.mxu0 0.0
    %676 = vmatpush1.msra.mxu0 0.0
    %677 = vmatprep.subr.mxu0 0.0
    %678 = vmatpush1.msra.mxu0 0.0
    %679 = vmatprep.subr.mxu0 0.0
    %680 = vmatpush1.msra.mxu0 0.0
    %681 = vmatprep.subr.mxu0 0.0
    %682 = vmatpush1.msra.mxu0 0.0
    %683 = vmatprep.subr.mxu0 0.0
    %684 = vmatpush1.msra.mxu0 0.0
    %685 = vmatprep.subr.mxu0 0.0
    %686 = vmatpush1.msra.mxu0 0.0
    %687 = vmatprep.subr.mxu0 0.0
    %688 = vmatpush1.msra.mxu0 0.0
    %689 = vmatprep.subr.mxu0 0.0
    %690 = vmatpush1.msra.mxu0 0.0
    %691 = vmatprep.subr.mxu0 0.0
    %692 = vmatpush1.msra.mxu0 0.0
    %693 = vmatprep.subr.mxu0 0.0
    %694 = vmatpush1.msra.mxu0 0.0
    %695 = vmatprep.mubr.f32.mxu0 0.0
    %696 = vmatmul.mubr.f32.gmra.mrb[0].mxu0 %v630
    %v697 = vpop.f32.mrb[0].mxu0
    %v698 = vadd.f32 0.0, %v697
    %v699 = vpop.f32.mrb[0].mxu0
    %700 = vdwg.mxu0
    %v701 = vmul.f32 %v698, %v698
    %v702 = vmul.f32 %v701, 2.0
    %v703 = vadd.f32 %v629, %v702
    %v704 = vmul.f32 %v475, %v477
    %705 = vmatprep.subr.mxu0 0.0
    %706 = vmatpush1.msra.mxu0 %v541
    %707 = vmatprep.subr.mxu0 0.0
    %708 = vmatpush1.msra.mxu0 %v542
    %709 = vmatprep.subr.mxu0 0.0
    %710 = vmatpush1.msra.mxu0 %v543
    %711 = vmatprep.subr.mxu0 0.0
    %712 = vmatpush1.msra.mxu0 %v544
    %713 = vmatprep.subr.mxu0 0.0
    %714 = vmatpush1.msra.mxu0 %v545
    %715 = vmatprep.subr.mxu0 0.0
    %716 = vmatpush1.msra.mxu0 %v546
    %717 = vmatprep.subr.mxu0 0.0
    %718 = vmatpush1.msra.mxu0 %v547
    %719 = vmatprep.subr.mxu0 0.0
    %720 = vmatpush1.msra.mxu0 %v548
    %721 = vmatprep.subr.mxu0 0.0
    %722 = vmatpush1.msra.mxu0 %v549
    %723 = vmatprep.subr.mxu0 0.0
    %724 = vmatpush1.msra.mxu0 %v550
    %725 = vmatprep.subr.mxu0 0.0
    %726 = vmatpush1.msra.mxu0 %v551
    %727 = vmatprep.subr.mxu0 0.0
    %728 = vmatpush1.msra.mxu0 %v552
    %729 = vmatprep.subr.mxu0 0.0
    %730 = vmatpush1.msra.mxu0 %v553
    %731 = vmatprep.subr.mxu0 0.0
    %732 = vmatpush1.msra.mxu0 %v554
    %733 = vmatprep.subr.mxu0 0.0
    %734 = vmatpush1.msra.mxu0 %v555
    %735 = vmatprep.subr.mxu0 0.0
    %736 = vmatpush1.msra.mxu0 %v556
    %737 = vmatprep.subr.mxu0 0.0
    %738 = vmatpush1.msra.mxu0 0.0
    %739 = vmatprep.subr.mxu0 0.0
    %740 = vmatpush1.msra.mxu0 0.0
    %741 = vmatprep.subr.mxu0 0.0
    %742 = vmatpush1.msra.mxu0 0.0
    %743 = vmatprep.subr.mxu0 0.0
    %744 = vmatpush1.msra.mxu0 0.0
    %745 = vmatprep.subr.mxu0 0.0
    %746 = vmatpush1.msra.mxu0 0.0
    %747 = vmatprep.subr.mxu0 0.0
    %748 = vmatpush1.msra.mxu0 0.0
    %749 = vmatprep.subr.mxu0 0.0
    %750 = vmatpush1.msra.mxu0 0.0
    %751 = vmatprep.subr.mxu0 0.0
    %752 = vmatpush1.msra.mxu0 0.0
    %753 = vmatprep.subr.mxu0 0.0
    %754 = vmatpush1.msra.mxu0 0.0
    %755 = vmatprep.subr.mxu0 0.0
    %756 = vmatpush1.msra.mxu0 0.0
    %757 = vmatprep.subr.mxu0 0.0
    %758 = vmatpush1.msra.mxu0 0.0
    %759 = vmatprep.subr.mxu0 0.0
    %760 = vmatpush1.msra.mxu0 0.0
    %761 = vmatprep.subr.mxu0 0.0
    %762 = vmatpush1.msra.mxu0 0.0
    %763 = vmatprep.subr.mxu0 0.0
    %764 = vmatpush1.msra.mxu0 0.0
    %765 = vmatprep.subr.mxu0 0.0
    %766 = vmatpush1.msra.mxu0 0.0
    %767 = vmatprep.subr.mxu0 0.0
    %768 = vmatpush1.msra.mxu0 0.0
    %769 = vmatprep.mubr.f32.mxu0 0.0
    %770 = vmatmul.mubr.f32.gmra.mrb[0].mxu0 %v704
    %v771 = vpop.f32.mrb[0].mxu0
    %v772 = vadd.f32 0.0, %v771
    %v773 = vpop.f32.mrb[0].mxu0
    %774 = vdwg.mxu0
    %v775 = vmul.f32 %v772, %v772
    %v776 = vmul.f32 %v775, 2.0
    %v777 = vadd.f32 %v703, %v776
    %v778 = vmul.f32 %v475, %v478
    %779 = vmatprep.subr.mxu0 0.0
    %780 = vmatpush1.msra.mxu0 %v541
    %781 = vmatprep.subr.mxu0 0.0
    %782 = vmatpush1.msra.mxu0 %v542
    %783 = vmatprep.subr.mxu0 0.0
    %784 = vmatpush1.msra.mxu0 %v543
    %785 = vmatprep.subr.mxu0 0.0
    %786 = vmatpush1.msra.mxu0 %v544
    %787 = vmatprep.subr.mxu0 0.0
    %788 = vmatpush1.msra.mxu0 %v545
    %789 = vmatprep.subr.mxu0 0.0
    %790 = vmatpush1.msra.mxu0 %v546
    %791 = vmatprep.subr.mxu0 0.0
    %792 = vmatpush1.msra.mxu0 %v547
    %793 = vmatprep.subr.mxu0 0.0
    %794 = vmatpush1.msra.mxu0 %v548
    %795 = vmatprep.subr.mxu0 0.0
    %796 = vmatpush1.msra.mxu0 %v549
    %797 = vmatprep.subr.mxu0 0.0
    %798 = vmatpush1.msra.mxu0 %v550
    %799 = vmatprep.subr.mxu0 0.0
    %800 = vmatpush1.msra.mxu0 %v551
    %801 = vmatprep.subr.mxu0 0.0
    %802 = vmatpush1.msra.mxu0 %v552
    %803 = vmatprep.subr.mxu0 0.0
    %804 = vmatpush1.msra.mxu0 %v553
    %805 = vmatprep.subr.mxu0 0.0
    %806 = vmatpush1.msra.mxu0 %v554
    %807 = vmatprep.subr.mxu0 0.0
    %808 = vmatpush1.msra.mxu0 %v555
    %809 = vmatprep.subr.mxu0 0.0
    %810 = vmatpush1.msra.mxu0 %v556
    %811 = vmatprep.subr.mxu0 0.0
    %812 = vmatpush1.msra.mxu0 0.0
    %813 = vmatprep.subr.mxu0 0.0
    %814 = vmatpush1.msra.mxu0 0.0
    %815 = vmatprep.subr.mxu0 0.0
    %816 = vmatpush1.msra.mxu0 0.0
    %817 = vmatprep.subr.mxu0 0.0
    %818 = vmatpush1.msra.mxu0 0.0
    %819 = vmatprep.subr.mxu0 0.0
    %820 = vmatpush1.msra.mxu0 0.0
    %821 = vmatprep.subr.mxu0 0.0
    %822 = vmatpush1.msra.mxu0 0.0
    %823 = vmatprep.subr.mxu0 0.0
    %824 = vmatpush1.msra.mxu0 0.0
    %825 = vmatprep.subr.mxu0 0.0
    %826 = vmatpush1.msra.mxu0 0.0
    %827 = vmatprep.subr.mxu0 0.0
    %828 = vmatpush1.msra.mxu0 0.0
    %829 = vmatprep.subr.mxu0 0.0
    %830 = vmatpush1.msra.mxu0 0.0
    %831 = vmatprep.subr.mxu0 0.0
    %832 = vmatpush1.msra.mxu0 0.0
    %833 = vmatprep.subr.mxu0 0.0
    %834 = vmatpush1.msra.mxu0 0.0
    %835 = vmatprep.subr.mxu0 0.0
    %836 = vmatpush1.msra.mxu0 0.0
    %837 = vmatprep.subr.mxu0 0.0
    %838 = vmatpush1.msra.mxu0 0.0
    %839 = vmatprep.subr.mxu0 0.0
    %840 = vmatpush1.msra.mxu0 0.0
    %841 = vmatprep.subr.mxu0 0.0
    %842 = vmatpush1.msra.mxu0 0.0
    %843 = vmatprep.mubr.f32.mxu0 0.0
    %844 = vmatmul.mubr.f32.gmra.mrb[0].mxu0 %v778
    %v845 = vpop.f32.mrb[0].mxu0
    %v846 = vadd.f32 0.0, %v845
    %v847 = vpop.f32.mrb[0].mxu0
    %848 = vdwg.mxu0
    %v849 = vmul.f32 %v846, %v846
    %v850 = vmul.f32 %v849, 2.0
    %v851 = vadd.f32 %v777, %v850
    %v852 = vmul.f32 %v476, %v476
    %853 = vmatprep.subr.mxu0 0.0
    %854 = vmatpush1.msra.mxu0 %v541
    %855 = vmatprep.subr.mxu0 0.0
    %856 = vmatpush1.msra.mxu0 %v542
    %857 = vmatprep.subr.mxu0 0.0
    %858 = vmatpush1.msra.mxu0 %v543
    %859 = vmatprep.subr.mxu0 0.0
    %860 = vmatpush1.msra.mxu0 %v544
    %861 = vmatprep.subr.mxu0 0.0
    %862 = vmatpush1.msra.mxu0 %v545
    %863 = vmatprep.subr.mxu0 0.0
    %864 = vmatpush1.msra.mxu0 %v546
    %865 = vmatprep.subr.mxu0 0.0
    %866 = vmatpush1.msra.mxu0 %v547
    %867 = vmatprep.subr.mxu0 0.0
    %868 = vmatpush1.msra.mxu0 %v548
    %869 = vmatprep.subr.mxu0 0.0
    %870 = vmatpush1.msra.mxu0 %v549
    %871 = vmatprep.subr.mxu0 0.0
    %872 = vmatpush1.msra.mxu0 %v550
    %873 = vmatprep.subr.mxu0 0.0
    %874 = vmatpush1.msra.mxu0 %v551
    %875 = vmatprep.subr.mxu0 0.0
    %876 = vmatpush1.msra.mxu0 %v552
    %877 = vmatprep.subr.mxu0 0.0
    %878 = vmatpush1.msra.mxu0 %v553
    %879 = vmatprep.subr.mxu0 0.0
    %880 = vmatpush1.msra.mxu0 %v554
    %881 = vmatprep.subr.mxu0 0.0
    %882 = vmatpush1.msra.mxu0 %v555
    %883 = vmatprep.subr.mxu0 0.0
    %884 = vmatpush1.msra.mxu0 %v556
    %885 = vmatprep.subr.mxu0 0.0
    %886 = vmatpush1.msra.mxu0 0.0
    %887 = vmatprep.subr.mxu0 0.0
    %888 = vmatpush1.msra.mxu0 0.0
    %889 = vmatprep.subr.mxu0 0.0
    %890 = vmatpush1.msra.mxu0 0.0
    %891 = vmatprep.subr.mxu0 0.0
    %892 = vmatpush1.msra.mxu0 0.0
    %893 = vmatprep.subr.mxu0 0.0
    %894 = vmatpush1.msra.mxu0 0.0
    %895 = vmatprep.subr.mxu0 0.0
    %896 = vmatpush1.msra.mxu0 0.0
    %897 = vmatprep.subr.mxu0 0.0
    %898 = vmatpush1.msra.mxu0 0.0
    %899 = vmatprep.subr.mxu0 0.0
    %900 = vmatpush1.msra.mxu0 0.0
    %901 = vmatprep.subr.mxu0 0.0
    %902 = vmatpush1.msra.mxu0 0.0
    %903 = vmatprep.subr.mxu0 0.0
    %904 = vmatpush1.msra.mxu0 0.0
    %905 = vmatprep.subr.mxu0 0.0
    %906 = vmatpush1.msra.mxu0 0.0
    %907 = vmatprep.subr.mxu0 0.0
    %908 = vmatpush1.msra.mxu0 0.0
    %909 = vmatprep.subr.mxu0 0.0
    %910 = vmatpush1.msra.mxu0 0.0
    %911 = vmatprep.subr.mxu0 0.0
    %912 = vmatpush1.msra.mxu0 0.0
    %913 = vmatprep.subr.mxu0 0.0
    %914 = vmatpush1.msra.mxu0 0.0
    %915 = vmatprep.subr.mxu0 0.0
    %916 = vmatpush1.msra.mxu0 0.0
    %917 = vmatprep.mubr.f32.mxu0 0.0
    %918 = vmatmul.mubr.f32.gmra.mrb[0].mxu0 %v852
    %v919 = vpop.f32.mrb[0].mxu0
    %v920 = vadd.f32 0.0, %v919
    %v921 = vpop.f32.mrb[0].mxu0
    %922 = vdwg.mxu0
    %v923 = vsub.f32 %v920, 2.0
    %v924 = vmul.f32 %v920, %v923
    %v925 = vadd.f32 %v851, %v924
    %v926 = vmul.f32 %v476, %v477
    %927 = vmatprep.subr.mxu0 0.0
    %928 = vmatpush1.msra.mxu0 %v541
    %929 = vmatprep.subr.mxu0 0.0
    %930 = vmatpush1.msra.mxu0 %v542
    %931 = vmatprep.subr.mxu0 0.0
    %932 = vmatpush1.msra.mxu0 %v543
    %933 = vmatprep.subr.mxu0 0.0
    %934 = vmatpush1.msra.mxu0 %v544
    %935 = vmatprep.subr.mxu0 0.0
    %936 = vmatpush1.msra.mxu0 %v545
    %937 = vmatprep.subr.mxu0 0.0
    %938 = vmatpush1.msra.mxu0 %v546
    %939 = vmatprep.subr.mxu0 0.0
    %940 = vmatpush1.msra.mxu0 %v547
    %941 = vmatprep.subr.mxu0 0.0
    %942 = vmatpush1.msra.mxu0 %v548
    %943 = vmatprep.subr.mxu0 0.0
    %944 = vmatpush1.msra.mxu0 %v549
    %945 = vmatprep.subr.mxu0 0.0
    %946 = vmatpush1.msra.mxu0 %v550
    %947 = vmatprep.subr.mxu0 0.0
    %948 = vmatpush1.msra.mxu0 %v551
    %949 = vmatprep.subr.mxu0 0.0
    %950 = vmatpush1.msra.mxu0 %v552
    %951 = vmatprep.subr.mxu0 0.0
    %952 = vmatpush1.msra.mxu0 %v553
    %953 = vmatprep.subr.mxu0 0.0
    %954 = vmatpush1.msra.mxu0 %v554
    %955 = vmatprep.subr.mxu0 0.0
    %956 = vmatpush1.msra.mxu0 %v555
    %957 = vmatprep.subr.mxu0 0.0
    %958 = vmatpush1.msra.mxu0 %v556
    %959 = vmatprep.subr.mxu0 0.0
    %960 = vmatpush1.msra.mxu0 0.0
    %961 = vmatprep.subr.mxu0 0.0
    %962 = vmatpush1.msra.mxu0 0.0
    %963 = vmatprep.subr.mxu0 0.0
    %964 = vmatpush1.msra.mxu0 0.0
    %965 = vmatprep.subr.mxu0 0.0
    %966 = vmatpush1.msra.mxu0 0.0
    %967 = vmatprep.subr.mxu0 0.0
    %968 = vmatpush1.msra.mxu0 0.0
    %969 = vmatprep.subr.mxu0 0.0
    %970 = vmatpush1.msra.mxu0 0.0
    %971 = vmatprep.subr.mxu0 0.0
    %972 = vmatpush1.msra.mxu0 0.0
    %973 = vmatprep.subr.mxu0 0.0
    %974 = vmatpush1.msra.mxu0 0.0
    %975 = vmatprep.subr.mxu0 0.0
    %976 = vmatpush1.msra.mxu0 0.0
    %977 = vmatprep.subr.mxu0 0.0
    %978 = vmatpush1.msra.mxu0 0.0
    %979 = vmatprep.subr.mxu0 0.0
    %980 = vmatpush1.msra.mxu0 0.0
    %981 = vmatprep.subr.mxu0 0.0
    %982 = vmatpush1.msra.mxu0 0.0
    %983 = vmatprep.subr.mxu0 0.0
    %984 = vmatpush1.msra.mxu0 0.0
    %985 = vmatprep.subr.mxu0 0.0
    %986 = vmatpush1.msra.mxu0 0.0
    %987 = vmatprep.subr.mxu0 0.0
    %988 = vmatpush1.msra.mxu0 0.0
    %989 = vmatprep.subr.mxu0 0.0
    %990 = vmatpush1.msra.mxu0 0.0
    %991 = vmatprep.mubr.f32.mxu0 0.0
    %992 = vmatmul.mubr.f32.gmra.mrb[0].mxu0 %v926
    %v993 = vpop.f32.mrb[0].mxu0
    %v994 = vadd.f32 0.0, %v993
    %v995 = vpop.f32.mrb[0].mxu0
    %996 = vdwg.mxu0
    %v997 = vmul.f32 %v994, %v994
    %v998 = vmul.f32 %v997, 2.0
    %v999 = vadd.f32 %v925, %v998
    %v1000 = vmul.f32 %v476, %v478
    %1001 = vmatprep.subr.mxu0 0.0
    %1002 = vmatpush1.msra.mxu0 %v541
    %1003 = vmatprep.subr.mxu0 0.0
    %1004 = vmatpush1.msra.mxu0 %v542
    %1005 = vmatprep.subr.mxu0 0.0
    %1006 = vmatpush1.msra.mxu0 %v543
    %1007 = vmatprep.subr.mxu0 0.0
    %1008 = vmatpush1.msra.mxu0 %v544
    %1009 = vmatprep.subr.mxu0 0.0
    %1010 = vmatpush1.msra.mxu0 %v545
    %1011 = vmatprep.subr.mxu0 0.0
    %1012 = vmatpush1.msra.mxu0 %v546
    %1013 = vmatprep.subr.mxu0 0.0
    %1014 = vmatpush1.msra.mxu0 %v547
    %1015 = vmatprep.subr.mxu0 0.0
    %1016 = vmatpush1.msra.mxu0 %v548
    %1017 = vmatprep.subr.mxu0 0.0
    %1018 = vmatpush1.msra.mxu0 %v549
    %1019 = vmatprep.subr.mxu0 0.0
    %1020 = vmatpush1.msra.mxu0 %v550
    %1021 = vmatprep.subr.mxu0 0.0
    %1022 = vmatpush1.msra.mxu0 %v551
    %1023 = vmatprep.subr.mxu0 0.0
    %1024 = vmatpush1.msra.mxu0 %v552
    %1025 = vmatprep.subr.mxu0 0.0
    %1026 = vmatpush1.msra.mxu0 %v553
    %1027 = vmatprep.subr.mxu0 0.0
    %1028 = vmatpush1.msra.mxu0 %v554
    %1029 = vmatprep.subr.mxu0 0.0
    %1030 = vmatpush1.msra.mxu0 %v555
    %1031 = vmatprep.subr.mxu0 0.0
    %1032 = vmatpush1.msra.mxu0 %v556
    %1033 = vmatprep.subr.mxu0 0.0
    %1034 = vmatpush1.msra.mxu0 0.0
    %1035 = vmatprep.subr.mxu0 0.0
    %1036 = vmatpush1.msra.mxu0 0.0
    %1037 = vmatprep.subr.mxu0 0.0
    %1038 = vmatpush1.msra.mxu0 0.0
    %1039 = vmatprep.subr.mxu0 0.0
    %1040 = vmatpush1.msra.mxu0 0.0
    %1041 = vmatprep.subr.mxu0 0.0
    %1042 = vmatpush1.msra.mxu0 0.0
    %1043 = vmatprep.subr.mxu0 0.0
    %1044 = vmatpush1.msra.mxu0 0.0
    %1045 = vmatprep.subr.mxu0 0.0
    %1046 = vmatpush1.msra.mxu0 0.0
    %1047 = vmatprep.subr.mxu0 0.0
    %1048 = vmatpush1.msra.mxu0 0.0
    %1049 = vmatprep.subr.mxu0 0.0
    %1050 = vmatpush1.msra.mxu0 0.0
    %1051 = vmatprep.subr.mxu0 0.0
    %1052 = vmatpush1.msra.mxu0 0.0
    %1053 = vmatprep.subr.mxu0 0.0
    %1054 = vmatpush1.msra.mxu0 0.0
    %1055 = vmatprep.subr.mxu0 0.0
    %1056 = vmatpush1.msra.mxu0 0.0
    %1057 = vmatprep.subr.mxu0 0.0
    %1058 = vmatpush1.msra.mxu0 0.0
    %1059 = vmatprep.subr.mxu0 0.0
    %1060 = vmatpush1.msra.mxu0 0.0
    %1061 = vmatprep.subr.mxu0 0.0
    %1062 = vmatpush1.msra.mxu0 0.0
    %1063 = vmatprep.subr.mxu0 0.0
    %1064 = vmatpush1.msra.mxu0 0.0
    %1065 = vmatprep.mubr.f32.mxu0 0.0
    %1066 = vmatmul.mubr.f32.gmra.mrb[0].mxu0 %v1000
    %v1067 = vpop.f32.mrb[0].mxu0
    %v1068 = vadd.f32 0.0, %v1067
    %v1069 = vpop.f32.mrb[0].mxu0
    %1070 = vdwg.mxu0
    %v1071 = vmul.f32 %v1068, %v1068
    %v1072 = vmul.f32 %v1071, 2.0
    %v1073 = vadd.f32 %v999, %v1072
    %v1074 = vmul.f32 %v477, %v477
    %1075 = vmatprep.subr.mxu0 0.0
    %1076 = vmatpush1.msra.mxu0 %v541
    %1077 = vmatprep.subr.mxu0 0.0
    %1078 = vmatpush1.msra.mxu0 %v542
    %1079 = vmatprep.subr.mxu0 0.0
    %1080 = vmatpush1.msra.mxu0 %v543
    %1081 = vmatprep.subr.mxu0 0.0
    %1082 = vmatpush1.msra.mxu0 %v544
    %1083 = vmatprep.subr.mxu0 0.0
    %1084 = vmatpush1.msra.mxu0 %v545
    %1085 = vmatprep.subr.mxu0 0.0
    %1086 = vmatpush1.msra.mxu0 %v546
    %1087 = vmatprep.subr.mxu0 0.0
    %1088 = vmatpush1.msra.mxu0 %v547
    %1089 = vmatprep.subr.mxu0 0.0
    %1090 = vmatpush1.msra.mxu0 %v548
    %1091 = vmatprep.subr.mxu0 0.0
    %1092 = vmatpush1.msra.mxu0 %v549
    %1093 = vmatprep.subr.mxu0 0.0
    %1094 = vmatpush1.msra.mxu0 %v550
    %1095 = vmatprep.subr.mxu0 0.0
    %1096 = vmatpush1.msra.mxu0 %v551
    %1097 = vmatprep.subr.mxu0 0.0
    %1098 = vmatpush1.msra.mxu0 %v552
    %1099 = vmatprep.subr.mxu0 0.0
    %1100 = vmatpush1.msra.mxu0 %v553
    %1101 = vmatprep.subr.mxu0 0.0
    %1102 = vmatpush1.msra.mxu0 %v554
    %1103 = vmatprep.subr.mxu0 0.0
    %1104 = vmatpush1.msra.mxu0 %v555
    %1105 = vmatprep.subr.mxu0 0.0
    %1106 = vmatpush1.msra.mxu0 %v556
    %1107 = vmatprep.subr.mxu0 0.0
    %1108 = vmatpush1.msra.mxu0 0.0
    %1109 = vmatprep.subr.mxu0 0.0
    %1110 = vmatpush1.msra.mxu0 0.0
    %1111 = vmatprep.subr.mxu0 0.0
    %1112 = vmatpush1.msra.mxu0 0.0
    %1113 = vmatprep.subr.mxu0 0.0
    %1114 = vmatpush1.msra.mxu0 0.0
    %1115 = vmatprep.subr.mxu0 0.0
    %1116 = vmatpush1.msra.mxu0 0.0
    %1117 = vmatprep.subr.mxu0 0.0
    %1118 = vmatpush1.msra.mxu0 0.0
    %1119 = vmatprep.subr.mxu0 0.0
    %1120 = vmatpush1.msra.mxu0 0.0
    %1121 = vmatprep.subr.mxu0 0.0
    %1122 = vmatpush1.msra.mxu0 0.0
    %1123 = vmatprep.subr.mxu0 0.0
    %1124 = vmatpush1.msra.mxu0 0.0
    %1125 = vmatprep.subr.mxu0 0.0
    %1126 = vmatpush1.msra.mxu0 0.0
    %1127 = vmatprep.subr.mxu0 0.0
    %1128 = vmatpush1.msra.mxu0 0.0
    %1129 = vmatprep.subr.mxu0 0.0
    %1130 = vmatpush1.msra.mxu0 0.0
    %1131 = vmatprep.subr.mxu0 0.0
    %1132 = vmatpush1.msra.mxu0 0.0
    %1133 = vmatprep.subr.mxu0 0.0
    %1134 = vmatpush1.msra.mxu0 0.0
    %1135 = vmatprep.subr.mxu0 0.0
    %1136 = vmatpush1.msra.mxu0 0.0
    %1137 = vmatprep.subr.mxu0 0.0
    %1138 = vmatpush1.msra.mxu0 0.0
    %1139 = vmatprep.mubr.f32.mxu0 0.0
    %1140 = vmatmul.mubr.f32.gmra.mrb[0].mxu0 %v1074
    %v1141 = vpop.f32.mrb[0].mxu0
    %v1142 = vadd.f32 0.0, %v1141
    %v1143 = vpop.f32.mrb[0].mxu0
    %1144 = vdwg.mxu0
    %v1145 = vsub.f32 %v1142, 2.0
    %v1146 = vmul.f32 %v1142, %v1145
    %v1147 = vadd.f32 %v1073, %v1146
    %v1148 = vmul.f32 %v477, %v478
    %1149 = vmatprep.subr.mxu0 0.0
    %1150 = vmatpush1.msra.mxu0 %v541
    %1151 = vmatprep.subr.mxu0 0.0
    %1152 = vmatpush1.msra.mxu0 %v542
    %1153 = vmatprep.subr.mxu0 0.0
    %1154 = vmatpush1.msra.mxu0 %v543
    %1155 = vmatprep.subr.mxu0 0.0
    %1156 = vmatpush1.msra.mxu0 %v544
    %1157 = vmatprep.subr.mxu0 0.0
    %1158 = vmatpush1.msra.mxu0 %v545
    %1159 = vmatprep.subr.mxu0 0.0
    %1160 = vmatpush1.msra.mxu0 %v546
    %1161 = vmatprep.subr.mxu0 0.0
    %1162 = vmatpush1.msra.mxu0 %v547
    %1163 = vmatprep.subr.mxu0 0.0
    %1164 = vmatpush1.msra.mxu0 %v548
    %1165 = vmatprep.subr.mxu0 0.0
    %1166 = vmatpush1.msra.mxu0 %v549
    %1167 = vmatprep.subr.mxu0 0.0
    %1168 = vmatpush1.msra.mxu0 %v550
    %1169 = vmatprep.subr.mxu0 0.0
    %1170 = vmatpush1.msra.mxu0 %v551
    %1171 = vmatprep.subr.mxu0 0.0
    %1172 = vmatpush1.msra.mxu0 %v552
    %1173 = vmatprep.subr.mxu0 0.0
    %1174 = vmatpush1.msra.mxu0 %v553
    %1175 = vmatprep.subr.mxu0 0.0
    %1176 = vmatpush1.msra.mxu0 %v554
    %1177 = vmatprep.subr.mxu0 0.0
    %1178 = vmatpush1.msra.mxu0 %v555
    %1179 = vmatprep.subr.mxu0 0.0
    %1180 = vmatpush1.msra.mxu0 %v556
    %1181 = vmatprep.subr.mxu0 0.0
    %1182 = vmatpush1.msra.mxu0 0.0
    %1183 = vmatprep.subr.mxu0 0.0
    %1184 = vmatpush1.msra.mxu0 0.0
    %1185 = vmatprep.subr.mxu0 0.0
    %1186 = vmatpush1.msra.mxu0 0.0
    %1187 = vmatprep.subr.mxu0 0.0
    %1188 = vmatpush1.msra.mxu0 0.0
    %1189 = vmatprep.subr.mxu0 0.0
    %1190 = vmatpush1.msra.mxu0 0.0
    %1191 = vmatprep.subr.mxu0 0.0
    %1192 = vmatpush1.msra.mxu0 0.0
    %1193 = vmatprep.subr.mxu0 0.0
    %1194 = vmatpush1.msra.mxu0 0.0
    %1195 = vmatprep.subr.mxu0 0.0
    %1196 = vmatpush1.msra.mxu0 0.0
    %1197 = vmatprep.subr.mxu0 0.0
    %1198 = vmatpush1.msra.mxu0 0.0
    %1199 = vmatprep.subr.mxu0 0.0
    %1200 = vmatpush1.msra.mxu0 0.0
    %1201 = vmatprep.subr.mxu0 0.0
    %1202 = vmatpush1.msra.mxu0 0.0
    %1203 = vmatprep.subr.mxu0 0.0
    %1204 = vmatpush1.msra.mxu0 0.0
    %1205 = vmatprep.subr.mxu0 0.0
    %1206 = vmatpush1.msra.mxu0 0.0
    %1207 = vmatprep.subr.mxu0 0.0
    %1208 = vmatpush1.msra.mxu0 0.0
    %1209 = vmatprep.subr.mxu0 0.0
    %1210 = vmatpush1.msra.mxu0 0.0
    %1211 = vmatprep.subr.mxu0 0.0
    %1212 = vmatpush1.msra.mxu0 0.0
    %1213 = vmatprep.mubr.f32.mxu0 0.0
    %1214 = vmatmul.mubr.f32.gmra.mrb[0].mxu0 %v1148
    %v1215 = vpop.f32.mrb[0].mxu0
    %v1216 = vadd.f32 0.0, %v1215
    %v1217 = vpop.f32.mrb[0].mxu0
    %1218 = vdwg.mxu0
    %v1219 = vmul.f32 %v1216, %v1216
    %v1220 = vmul.f32 %v1219, 2.0
    %v1221 = vadd.f32 %v1147, %v1220
    %v1222 = vmul.f32 %v478, %v478
    %1223 = vmatprep.subr.mxu0 0.0
    %1224 = vmatpush1.msra.mxu0 %v541
    %1225 = vmatprep.subr.mxu0 0.0
    %1226 = vmatpush1.msra.mxu0 %v542
    %1227 = vmatprep.subr.mxu0 0.0
    %1228 = vmatpush1.msra.mxu0 %v543
    %1229 = vmatprep.subr.mxu0 0.0
    %1230 = vmatpush1.msra.mxu0 %v544
    %1231 = vmatprep.subr.mxu0 0.0
    %1232 = vmatpush1.msra.mxu0 %v545
    %1233 = vmatprep.subr.mxu0 0.0
    %1234 = vmatpush1.msra.mxu0 %v546
    %1235 = vmatprep.subr.mxu0 0.0
    %1236 = vmatpush1.msra.mxu0 %v547
    %1237 = vmatprep.subr.mxu0 0.0
    %1238 = vmatpush1.msra.mxu0 %v548
    %1239 = vmatprep.subr.mxu0 0.0
    %1240 = vmatpush1.msra.mxu0 %v549
    %1241 = vmatprep.subr.mxu0 0.0
    %1242 = vmatpush1.msra.mxu0 %v550
    %1243 = vmatprep.subr.mxu0 0.0
    %1244 = vmatpush1.msra.mxu0 %v551
    %1245 = vmatprep.subr.mxu0 0.0
    %1246 = vmatpush1.msra.mxu0 %v552
    %1247 = vmatprep.subr.mxu0 0.0
    %1248 = vmatpush1.msra.mxu0 %v553
    %1249 = vmatprep.subr.mxu0 0.0
    %1250 = vmatpush1.msra.mxu0 %v554
    %1251 = vmatprep.subr.mxu0 0.0
    %1252 = vmatpush1.msra.mxu0 %v555
    %1253 = vmatprep.subr.mxu0 0.0
    %1254 = vmatpush1.msra.mxu0 %v556
    %1255 = vmatprep.subr.mxu0 0.0
    %1256 = vmatpush1.msra.mxu0 0.0
    %1257 = vmatprep.subr.mxu0 0.0
    %1258 = vmatpush1.msra.mxu0 0.0
    %1259 = vmatprep.subr.mxu0 0.0
    %1260 = vmatpush1.msra.mxu0 0.0
    %1261 = vmatprep.subr.mxu0 0.0
    %1262 = vmatpush1.msra.mxu0 0.0
    %1263 = vmatprep.subr.mxu0 0.0
    %1264 = vmatpush1.msra.mxu0 0.0
    %1265 = vmatprep.subr.mxu0 0.0
    %1266 = vmatpush1.msra.mxu0 0.0
    %1267 = vmatprep.subr.mxu0 0.0
    %1268 = vmatpush1.msra.mxu0 0.0
    %1269 = vmatprep.subr.mxu0 0.0
    %1270 = vmatpush1.msra.mxu0 0.0
    %1271 = vmatprep.subr.mxu0 0.0
    %1272 = vmatpush1.msra.mxu0 0.0
    %1273 = vmatprep.subr.mxu0 0.0
    %1274 = vmatpush1.msra.mxu0 0.0
    %1275 = vmatprep.subr.mxu0 0.0
    %1276 = vmatpush1.msra.mxu0 0.0
    %1277 = vmatprep.subr.mxu0 0.0
    %1278 = vmatpush1.msra.mxu0 0.0
    %1279 = vmatprep.subr.mxu0 0.0
    %1280 = vmatpush1.msra.mxu0 0.0
    %1281 = vmatprep.subr.mxu0 0.0
    %1282 = vmatpush1.msra.mxu0 0.0
    %1283 = vmatprep.subr.mxu0 0.0
    %1284 = vmatpush1.msra.mxu0 0.0
    %1285 = vmatprep.subr.mxu0 0.0
    %1286 = vmatpush1.msra.mxu0 0.0
    %1287 = vmatprep.mubr.f32.mxu0 0.0
    %1288 = vmatmul.mubr.f32.gmra.mrb[0].mxu0 %v1222
    %v1289 = vpop.f32.mrb[0].mxu0
    %v1290 = vadd.f32 0.0, %v1289
    %v1291 = vpop.f32.mrb[0].mxu0
    %1292 = vdwg.mxu0
    %v1293 = vsub.f32 %v1290, 2.0
    %v1294 = vmul.f32 %v1290, %v1293
    %v1295 = vadd.f32 %v1221, %v1294
    %vm1296 = vcmask 15360
    %v1297 = vsel %vm1296, %v1295, 0.0
    %v1298 = vrot.slane %v1297, 4
    %v1299 = vadd.f32 %v1297, %v1298
    %v1300 = vrot.slane %v1299, 2
    %v1301 = vadd.f32 %v1299, %v1300
    %v1302 = vrot.slane %v1301, 1
    %v1303 = vadd.f32 %v1301, %v1302
    %v1304 = vsel %vm1296, %v1303, 0.0
    %1305 = vadd.xlane.f32.xlu0 %v1304
    %v1306 = vpop.xlane.xlu0 %1305
    %1307 = vst [vmem:[#allocation11] sm:$0x1] %v1306
    // Predicated region
    $region34: #{self_atten_forward.1} parent=1 // pred_check
      _
    $region35: #{self_atten_forward.1} parent=1 // pred_check_branch
      %1309 = sbr.rel (0) target = $region37
    $region36: #{self_atten_forward.1} parent=1 // pred_region
      %s1311 = ssub.s32 128, 128
      %1312 = vsyncadd [#allocation4], %s1311
      %s1314 = sshll.u32 [#allocation10], 4
      %s1315 = int_to_ptr.vmem [resolvable:$true] %s1314
      %1317 = dma.vmem_to_hbm [thread:$0]  %s1315, 128, %s4, [#allocation4]
    $region37: #{self_atten_forward.1} parent=1 // pred_fallthru
      _
    // Predicated region
    $region38: #{self_atten_forward.1} parent=1 // pred_check
      _
    $region39: #{self_atten_forward.1} parent=1 // pred_check_branch
      %1319 = sbr.rel (0) target = $region41
    $region40: #{self_atten_forward.1} parent=1 // pred_region
      %s1321 = ssub.s32 16, 16
      %1322 = vsyncadd [#allocation12], %s1321
      %s1324 = sshll.u32 [#allocation11], 4
      %s1325 = int_to_ptr.vmem [resolvable:$true] %s1324
      %1327 = dma.vmem_to_hbm [thread:$0]  %s1325, 16, %s5, [#allocation12]
    $region41: #{self_atten_forward.1} parent=1 // pred_fallthru
      _
    // Predicated region
    $region42: #{self_atten_forward.1} parent=1 // pred_check
      _
    $region43: #{self_atten_forward.1} parent=1 // pred_check_branch
      %1329 = sbr.rel (0) target = $region45
    $region44: #{self_atten_forward.1} parent=1 // pred_region
      %1330 = dma.done [#allocation4], 128
    $region45: #{self_atten_forward.1} parent=1 // pred_fallthru
      _
    // Predicated region
    $region46: #{self_atten_forward.1} parent=1 // pred_check
      _
    $region47: #{self_atten_forward.1} parent=1 // pred_check_branch
      %1332 = sbr.rel (0) target = $region49
    $region48: #{self_atten_forward.1} parent=1 // pred_region
      %1333 = dma.done [#allocation12], 16
    $region49: #{self_atten_forward.1} parent=1 // pred_fallthru
      _
    %1334 = vsyncpa [#allocation3], 1
    %1335 = vsyncpa [#allocation6], 1
    %1336 = vsyncpa [#allocation9], 1
    %1337 = vsyncpa [#allocation4], 1
    %1338 = vsyncpa [#allocation12], 1

</llo_original>
